<compile_context>
chip_gen: v6e
topology: v6e:2x2x1
jax: 0.10.0
libtpu: 0.0.40
codegen_flags: <defaults>
</compile_context>

<pallas_src>
import jax
import jax.numpy as jnp
from jax import lax
from jax.experimental import pallas as pl
from jax.experimental.pallas import tpu as pltpu

EPS = 1e-5


def repvgg_block_kernel(x_ref, w_ref, b_ref, o_ref):
    """One (batch, row-tile, Cout-tile) step of the reparameterized block.

    x_ref : (1, (H+3)*(W+2), Cin)  flat zero-padded NHWC input (resident per n)
    w_ref : (9, Cin, CT)           branch-folded 3x3 weights, tap-major (kh*3+kw)
    b_ref : (1, CT)                branch-folded bias (f32)
    o_ref : (1, TH, W, CT)         output row tile
    """
    _, th, w_out, ct = o_ref.shape
    wp = w_out + 2                     # padded row width
    m = th * wp                        # matmul M dim (over-wide by 2 cols/row)

    r = pl.program_id(1)
    base = r * m
    if m % 8 == 0:
        base = pl.multiple_of(base, 8)

    # 9 taps = 9 CONTIGUOUS slices of the flat padded image (contiguous slice +
    # contiguous reshape -> no per-tap VMEM relayout).
    acc = jnp.zeros((m, ct), jnp.float32)
    for kh in range(3):
        for kw in range(3):
            patch = x_ref[0, pl.ds(base + kh * wp + kw, m), :]
            acc += jnp.dot(patch, w_ref[kh * 3 + kw],
                           preferred_element_type=jnp.float32)

    # Single fused bias add + ReLU in f32 (junk columns included, never stored).
    y = jnp.maximum(acc + b_ref[...], 0.0)

    # Crop the (W+2) -> W junk columns with TH small contiguous row copies.
    for t in range(th):
        o_ref[0, t, :, :] = y[t * wp:t * wp + w_out, :].astype(o_ref.dtype)


def repvgg_block_pallas(x_nhwc, fused, *, row_tile=8, cout_tile=256,
                        compute_dtype=jnp.float32):
    """x_nhwc: (N, H, W, Cin) float32. Returns (N, H, W, Cout) float32."""
    w_pk, b_pk = fused
    N, H, W, Cin = x_nhwc.shape
    Cout = w_pk.shape[-1]
    Wp = W + 2

    th = min(row_tile, H)
    while H % th:                      # make the row tile divide H
        th -= 1
    ct = Cout if Cout <= cout_tile else cout_tile
    assert Cout % ct == 0

    # Zero-pad: 1 row top, 2 rows bottom (the extra bottom row keeps the last
    # contiguous tap slice in-bounds), 1 column left/right; then flatten (H, W).
    # TODO(synk): the pad is still one extra XLA HBM round trip; an overlapping
    # halo BlockSpec (pl.Element) could remove it.
    xp = jnp.pad(x_nhwc, ((0, 0), (1, 2), (1, 1), (0, 0)))
    flat = (H + 3) * Wp
    xp = xp.reshape(N, flat, Cin).astype(compute_dtype)

    w = w_pk.astype(compute_dtype)
    b = b_pk.astype(jnp.float32)

    grid = (N, H // th, Cout // ct)
    return pl.pallas_call(
        repvgg_block_kernel,
        out_shape=jax.ShapeDtypeStruct((N, H, W, Cout), jnp.float32),
        grid_spec=pltpu.PrefetchScalarGridSpec(
            num_scalar_prefetch=0,
            grid=grid,
            in_specs=[
                # Whole padded image, resident across the r/c axes (DMA'd once per n).
                pl.BlockSpec((1, flat, Cin), lambda n, r, c: (n, 0, 0)),
                pl.BlockSpec((9, Cin, ct), lambda n, r, c: (0, 0, c)),
                pl.BlockSpec((1, ct), lambda n, r, c: (0, c)),
            ],
            out_specs=pl.BlockSpec((1, th, W, ct), lambda n, r, c: (n, r, 0, c)),
        ),
        compiler_params=pltpu.CompilerParams(
            dimension_semantics=("parallel", "parallel", "parallel")),
    )(xp, w, b)


# ----------------------------- parameter setup ------------------------------

def init_params(key, cin, cout):
    """Deterministic synthetic parameters matching RepVGGBlock.__init__ shapes."""
    ks = jax.random.split(key, 16)
    u = lambda k, shape: jax.random.uniform(k, shape, jnp.float32, 0.5, 1.5)
    n = lambda k, shape, s=0.1: s * jax.random.normal(k, shape, jnp.float32)
    return {
        # rbr_dense: Conv2d(cin, cout, 3, bias=False) + BatchNorm2d(cout)
        "w3": n(ks[0], (cout, cin, 3, 3)),
        "bn3_gamma": u(ks[1], (cout,)), "bn3_beta": n(ks[2], (cout,)),
        "bn3_mean": n(ks[3], (cout,)), "bn3_var": u(ks[4], (cout,)),
        # rbr_1x1: Conv2d(cin, cout, 1, bias=False) + BatchNorm2d(cout)
        "w1": n(ks[5], (cout, cin, 1, 1)),
        "bn1_gamma": u(ks[6], (cout,)), "bn1_beta": n(ks[7], (cout,)),
        "bn1_mean": n(ks[8], (cout,)), "bn1_var": u(ks[9], (cout,)),
        # rbr_identity: BatchNorm2d(cin)
        "bnid_gamma": u(ks[10], (cin,)), "bnid_beta": n(ks[11], (cin,)),
        "bnid_mean": n(ks[12], (cin,)), "bnid_var": u(ks[13], (cin,)),
    }


def fuse_params(p):
    """Fold eval-mode BNs and all three branches into one 3x3 kernel + bias.

    Exact RepVGG reparameterization (matches get_equivalent_kernel_bias) —
    numerically identical to the 3-branch forward under eval-mode BN.
    Returns (w_packed (9, Cin, Cout) tap-major HWIO, b_packed (1, Cout)).
    """
    cout, cin = p["w3"].shape[0], p["w3"].shape[1]

    s3 = p["bn3_gamma"] / jnp.sqrt(p["bn3_var"] + EPS)
    w3 = jnp.transpose(p["w3"], (2, 3, 1, 0)) * s3               # HWIO, scaled
    b3 = p["bn3_beta"] - p["bn3_mean"] * s3

    s1 = p["bn1_gamma"] / jnp.sqrt(p["bn1_var"] + EPS)
    w1 = (p["w1"] * s1[:, None, None, None])[:, :, 0, 0].T        # (Cin, Cout)
    b1 = p["bn1_beta"] - p["bn1_mean"] * s1

    center = w1
    bias = b3 + b1
    if cin == cout:                                               # identity branch exists
        sid = p["bnid_gamma"] / jnp.sqrt(p["bnid_var"] + EPS)
        center = center + jnp.diag(sid)
        bias = bias + (p["bnid_beta"] - p["bnid_mean"] * sid)

    w_eq = w3.at[1, 1].add(center)                                # fold into center tap
    return w_eq.reshape(9, cin, cout), bias.reshape(1, cout)


def reference_forward(x_nhwc, p):
    """Pure-JAX reference replicating the PyTorch forward (eval BN)."""
    dn = ("NHWC", "HWIO", "NHWC")
    w3 = jnp.transpose(p["w3"], (2, 3, 1, 0))
    y3 = lax.conv_general_dilated(x_nhwc, w3, (1, 1), ((1, 1), (1, 1)),
                                  dimension_numbers=dn)
    y3 = (y3 - p["bn3_mean"]) * p["bn3_gamma"] / jnp.sqrt(p["bn3_var"] + EPS) \
        + p["bn3_beta"]

    w1 = jnp.transpose(p["w1"], (2, 3, 1, 0))
    y1 = lax.conv_general_dilated(x_nhwc, w1, (1, 1), ((0, 0), (0, 0)),
                                  dimension_numbers=dn)
    y1 = (y1 - p["bn1_mean"]) * p["bn1_gamma"] / jnp.sqrt(p["bn1_var"] + EPS) \
        + p["bn1_beta"]

    yid = (x_nhwc - p["bnid_mean"]) * p["bnid_gamma"] \
        / jnp.sqrt(p["bnid_var"] + EPS) + p["bnid_beta"]

    return jnp.maximum(y3 + y1 + yid, 0.0)


if __name__ == "__main__":
    key = jax.random.PRNGKey(0)
    k_x, k_p = jax.random.split(key)

    N, C, H, W = 2, 4, 16, 16                       # in_channels == out_channels
    x_nchw = jax.random.normal(k_x, (N, C, H, W), jnp.float32)   # PyTorch layout
    x_nhwc = jnp.transpose(x_nchw, (0, 2, 3, 1))                 # kernel layout

    params = init_params(k_p, C, C)
    fused = fuse_params(params)

    ref = jax.block_until_ready(reference_forward(x_nhwc, params))

    # f32 matmul path — exact module semantics, tight tolerance.
    out32 = jax.block_until_ready(
        repvgg_block_pallas(x_nhwc, fused, compute_dtype=jnp.float32))
    assert out32.shape == (N, H, W, C)
    assert jnp.allclose(out32, ref, rtol=1e-4, atol=1e-4), (
        float(jnp.max(jnp.abs(out32 - ref))))

    # bf16 matmul path (perf feedback: native MXU rate, half the DMA bytes);
    # f32 accumulation, so only input/weight rounding error remains.
    out16 = jax.block_until_ready(
        repvgg_block_pallas(x_nhwc, fused, compute_dtype=jnp.bfloat16))
    assert jnp.allclose(out16, ref, rtol=1e-1, atol=1e-1), (
        float(jnp.max(jnp.abs(out16 - ref))))

    print("KERNEL_OK")
</pallas_src>

<mosaic_0001>
module attributes {stable_mosaic.version = 11 : i64} {
  func.func @repvgg_block_kernel(%arg0: i32, %arg1: i32, %arg2: i32, %arg3: memref<1x342x4xf32, #tpu.memory_space<vmem>>, %arg4: memref<9x4x4xf32, #tpu.memory_space<vmem>>, %arg5: memref<1x4xf32, #tpu.memory_space<vmem>>, %arg6: memref<1x8x16x4xf32, #tpu.memory_space<vmem>>) attributes {dimension_semantics = [#tpu.dimension_semantics<parallel>, #tpu.dimension_semantics<parallel>, #tpu.dimension_semantics<parallel>], iteration_bounds = array<i64: 2, 2, 1>, scalar_prefetch = 0 : i64, scratch_operands = 0 : i64, tpu.core_type = #tpu.core_type<tc>, window_params = [{transform_indices = @transform_0, window_bounds = array<i64: 1, 342, 4>}, {transform_indices = @transform_1, window_bounds = array<i64: 9, 4, 4>}, {transform_indices = @transform_2, window_bounds = array<i64: 1, 4>}, {transform_indices = @transform_3, window_bounds = array<i64: 1, 8, 16, 4>}]} {
    %c144_i32 = arith.constant 144 : i32
    %0 = arith.muli %arg1, %c144_i32 : i32
    %1 = tpu.assume_multiple %0, 8 : i32
    %cst = arith.constant 0.000000e+00 : f32
    %2 = vector.broadcast %cst : f32 to vector<144x4xf32>
    %c0_i32 = arith.constant 0 : i32
    %3 = arith.addi %1, %c0_i32 : i32
    %c0_i32_0 = arith.constant 0 : i32
    %4 = arith.addi %3, %c0_i32_0 : i32
    %c0 = arith.constant 0 : index
    %5 = arith.index_cast %4 : i32 to index
    %c0_1 = arith.constant 0 : index
    %6 = vector.load %arg3[%c0, %5, %c0_1] : memref<1x342x4xf32, #tpu.memory_space<vmem>>, vector<1x144x4xf32>
    %7 = vector.shape_cast %6 : vector<1x144x4xf32> to vector<144x4xf32>
    %c0_2 = arith.constant 0 : index
    %c0_3 = arith.constant 0 : index
    %c0_4 = arith.constant 0 : index
    %8 = vector.load %arg4[%c0_2, %c0_3, %c0_4] : memref<9x4x4xf32, #tpu.memory_space<vmem>>, vector<1x4x4xf32>
    %9 = vector.shape_cast %8 : vector<1x4x4xf32> to vector<4x4xf32>
    %cst_5 = arith.constant dense<0.000000e+00> : vector<144x4xf32>
    %10 = tpu.matmul %7, %9, %cst_5 {dimension_numbers = #tpu.dot_dimension_numbers<[1], [0], [0], [1], [0, 0, 1, 1], [], []>} : vector<144x4xf32>, vector<4x4xf32>, vector<144x4xf32> -> vector<144x4xf32>
    %11 = arith.addf %2, %10 : vector<144x4xf32>
    %c0_i32_6 = arith.constant 0 : i32
    %12 = arith.addi %1, %c0_i32_6 : i32
    %c1_i32 = arith.constant 1 : i32
    %13 = arith.addi %12, %c1_i32 : i32
    %c0_7 = arith.constant 0 : index
    %14 = arith.index_cast %13 : i32 to index
    %c0_8 = arith.constant 0 : index
    %15 = vector.load %arg3[%c0_7, %14, %c0_8] : memref<1x342x4xf32, #tpu.memory_space<vmem>>, vector<1x144x4xf32>
    %16 = vector.shape_cast %15 : vector<1x144x4xf32> to vector<144x4xf32>
    %c1 = arith.constant 1 : index
    %c0_9 = arith.constant 0 : index
    %c0_10 = arith.constant 0 : index
    %17 = vector.load %arg4[%c1, %c0_9, %c0_10] : memref<9x4x4xf32, #tpu.memory_space<vmem>>, vector<1x4x4xf32>
    %18 = vector.shape_cast %17 : vector<1x4x4xf32> to vector<4x4xf32>
    %cst_11 = arith.constant dense<0.000000e+00> : vector<144x4xf32>
    %19 = tpu.matmul %16, %18, %cst_11 {dimension_numbers = #tpu.dot_dimension_numbers<[1], [0], [0], [1], [0, 0, 1, 1], [], []>} : vector<144x4xf32>, vector<4x4xf32>, vector<144x4xf32> -> vector<144x4xf32>
    %20 = arith.addf %11, %19 : vector<144x4xf32>
    %c0_i32_12 = arith.constant 0 : i32
    %21 = arith.addi %1, %c0_i32_12 : i32
    %c2_i32 = arith.constant 2 : i32
    %22 = arith.addi %21, %c2_i32 : i32
    %c0_13 = arith.constant 0 : index
    %23 = arith.index_cast %22 : i32 to index
    %c0_14 = arith.constant 0 : index
    %24 = vector.load %arg3[%c0_13, %23, %c0_14] : memref<1x342x4xf32, #tpu.memory_space<vmem>>, vector<1x144x4xf32>
    %25 = vector.shape_cast %24 : vector<1x144x4xf32> to vector<144x4xf32>
    %c2 = arith.constant 2 : index
    %c0_15 = arith.constant 0 : index
    %c0_16 = arith.constant 0 : index
    %26 = vector.load %arg4[%c2, %c0_15, %c0_16] : memref<9x4x4xf32, #tpu.memory_space<vmem>>, vector<1x4x4xf32>
    %27 = vector.shape_cast %26 : vector<1x4x4xf32> to vector<4x4xf32>
    %cst_17 = arith.constant dense<0.000000e+00> : vector<144x4xf32>
    %28 = tpu.matmul %25, %27, %cst_17 {dimension_numbers = #tpu.dot_dimension_numbers<[1], [0], [0], [1], [0, 0, 1, 1], [], []>} : vector<144x4xf32>, vector<4x4xf32>, vector<144x4xf32> -> vector<144x4xf32>
    %29 = arith.addf %20, %28 : vector<144x4xf32>
    %c18_i32 = arith.constant 18 : i32
    %30 = arith.addi %1, %c18_i32 : i32
    %c0_i32_18 = arith.constant 0 : i32
    %31 = arith.addi %30, %c0_i32_18 : i32
    %c0_19 = arith.constant 0 : index
    %32 = arith.index_cast %31 : i32 to index
    %c0_20 = arith.constant 0 : index
    %33 = vector.load %arg3[%c0_19, %32, %c0_20] : memref<1x342x4xf32, #tpu.memory_space<vmem>>, vector<1x144x4xf32>
    %34 = vector.shape_cast %33 : vector<1x144x4xf32> to vector<144x4xf32>
    %c3 = arith.constant 3 : index
    %c0_21 = arith.constant 0 : index
    %c0_22 = arith.constant 0 : index
    %35 = vector.load %arg4[%c3, %c0_21, %c0_22] : memref<9x4x4xf32, #tpu.memory_space<vmem>>, vector<1x4x4xf32>
    %36 = vector.shape_cast %35 : vector<1x4x4xf32> to vector<4x4xf32>
    %cst_23 = arith.constant dense<0.000000e+00> : vector<144x4xf32>
    %37 = tpu.matmul %34, %36, %cst_23 {dimension_numbers = #tpu.dot_dimension_numbers<[1], [0], [0], [1], [0, 0, 1, 1], [], []>} : vector<144x4xf32>, vector<4x4xf32>, vector<144x4xf32> -> vector<144x4xf32>
    %38 = arith.addf %29, %37 : vector<144x4xf32>
    %c18_i32_24 = arith.constant 18 : i32
    %39 = arith.addi %1, %c18_i32_24 : i32
    %c1_i32_25 = arith.constant 1 : i32
    %40 = arith.addi %39, %c1_i32_25 : i32
    %c0_26 = arith.constant 0 : index
    %41 = arith.index_cast %40 : i32 to index
    %c0_27 = arith.constant 0 : index
    %42 = vector.load %arg3[%c0_26, %41, %c0_27] : memref<1x342x4xf32, #tpu.memory_space<vmem>>, vector<1x144x4xf32>
    %43 = vector.shape_cast %42 : vector<1x144x4xf32> to vector<144x4xf32>
    %c4 = arith.constant 4 : index
    %c0_28 = arith.constant 0 : index
    %c0_29 = arith.constant 0 : index
    %44 = vector.load %arg4[%c4, %c0_28, %c0_29] : memref<9x4x4xf32, #tpu.memory_space<vmem>>, vector<1x4x4xf32>
    %45 = vector.shape_cast %44 : vector<1x4x4xf32> to vector<4x4xf32>
    %cst_30 = arith.constant dense<0.000000e+00> : vector<144x4xf32>
    %46 = tpu.matmul %43, %45, %cst_30 {dimension_numbers = #tpu.dot_dimension_numbers<[1], [0], [0], [1], [0, 0, 1, 1], [], []>} : vector<144x4xf32>, vector<4x4xf32>, vector<144x4xf32> -> vector<144x4xf32>
    %47 = arith.addf %38, %46 : vector<144x4xf32>
    %c18_i32_31 = arith.constant 18 : i32
    %48 = arith.addi %1, %c18_i32_31 : i32
    %c2_i32_32 = arith.constant 2 : i32
    %49 = arith.addi %48, %c2_i32_32 : i32
    %c0_33 = arith.constant 0 : index
    %50 = arith.index_cast %49 : i32 to index
    %c0_34 = arith.constant 0 : index
    %51 = vector.load %arg3[%c0_33, %50, %c0_34] : memref<1x342x4xf32, #tpu.memory_space<vmem>>, vector<1x144x4xf32>
    %52 = vector.shape_cast %51 : vector<1x144x4xf32> to vector<144x4xf32>
    %c5 = arith.constant 5 : index
    %c0_35 = arith.constant 0 : index
    %c0_36 = arith.constant 0 : index
    %53 = vector.load %arg4[%c5, %c0_35, %c0_36] : memref<9x4x4xf32, #tpu.memory_space<vmem>>, vector<1x4x4xf32>
    %54 = vector.shape_cast %53 : vector<1x4x4xf32> to vector<4x4xf32>
    %cst_37 = arith.constant dense<0.000000e+00> : vector<144x4xf32>
    %55 = tpu.matmul %52, %54, %cst_37 {dimension_numbers = #tpu.dot_dimension_numbers<[1], [0], [0], [1], [0, 0, 1, 1], [], []>} : vector<144x4xf32>, vector<4x4xf32>, vector<144x4xf32> -> vector<144x4xf32>
    %56 = arith.addf %47, %55 : vector<144x4xf32>
    %c36_i32 = arith.constant 36 : i32
    %57 = arith.addi %1, %c36_i32 : i32
    %c0_i32_38 = arith.constant 0 : i32
    %58 = arith.addi %57, %c0_i32_38 : i32
    %c0_39 = arith.constant 0 : index
    %59 = arith.index_cast %58 : i32 to index
    %c0_40 = arith.constant 0 : index
    %60 = vector.load %arg3[%c0_39, %59, %c0_40] : memref<1x342x4xf32, #tpu.memory_space<vmem>>, vector<1x144x4xf32>
    %61 = vector.shape_cast %60 : vector<1x144x4xf32> to vector<144x4xf32>
    %c6 = arith.constant 6 : index
    %c0_41 = arith.constant 0 : index
    %c0_42 = arith.constant 0 : index
    %62 = vector.load %arg4[%c6, %c0_41, %c0_42] : memref<9x4x4xf32, #tpu.memory_space<vmem>>, vector<1x4x4xf32>
    %63 = vector.shape_cast %62 : vector<1x4x4xf32> to vector<4x4xf32>
    %cst_43 = arith.constant dense<0.000000e+00> : vector<144x4xf32>
    %64 = tpu.matmul %61, %63, %cst_43 {dimension_numbers = #tpu.dot_dimension_numbers<[1], [0], [0], [1], [0, 0, 1, 1], [], []>} : vector<144x4xf32>, vector<4x4xf32>, vector<144x4xf32> -> vector<144x4xf32>
    %65 = arith.addf %56, %64 : vector<144x4xf32>
    %c36_i32_44 = arith.constant 36 : i32
    %66 = arith.addi %1, %c36_i32_44 : i32
    %c1_i32_45 = arith.constant 1 : i32
    %67 = arith.addi %66, %c1_i32_45 : i32
    %c0_46 = arith.constant 0 : index
    %68 = arith.index_cast %67 : i32 to index
    %c0_47 = arith.constant 0 : index
    %69 = vector.load %arg3[%c0_46, %68, %c0_47] : memref<1x342x4xf32, #tpu.memory_space<vmem>>, vector<1x144x4xf32>
    %70 = vector.shape_cast %69 : vector<1x144x4xf32> to vector<144x4xf32>
    %c7 = arith.constant 7 : index
    %c0_48 = arith.constant 0 : index
    %c0_49 = arith.constant 0 : index
    %71 = vector.load %arg4[%c7, %c0_48, %c0_49] : memref<9x4x4xf32, #tpu.memory_space<vmem>>, vector<1x4x4xf32>
    %72 = vector.shape_cast %71 : vector<1x4x4xf32> to vector<4x4xf32>
    %cst_50 = arith.constant dense<0.000000e+00> : vector<144x4xf32>
    %73 = tpu.matmul %70, %72, %cst_50 {dimension_numbers = #tpu.dot_dimension_numbers<[1], [0], [0], [1], [0, 0, 1, 1], [], []>} : vector<144x4xf32>, vector<4x4xf32>, vector<144x4xf32> -> vector<144x4xf32>
    %74 = arith.addf %65, %73 : vector<144x4xf32>
    %c36_i32_51 = arith.constant 36 : i32
    %75 = arith.addi %1, %c36_i32_51 : i32
    %c2_i32_52 = arith.constant 2 : i32
    %76 = arith.addi %75, %c2_i32_52 : i32
    %c0_53 = arith.constant 0 : index
    %77 = arith.index_cast %76 : i32 to index
    %c0_54 = arith.constant 0 : index
    %78 = vector.load %arg3[%c0_53, %77, %c0_54] : memref<1x342x4xf32, #tpu.memory_space<vmem>>, vector<1x144x4xf32>
    %79 = vector.shape_cast %78 : vector<1x144x4xf32> to vector<144x4xf32>
    %c8 = arith.constant 8 : index
    %c0_55 = arith.constant 0 : index
    %c0_56 = arith.constant 0 : index
    %80 = vector.load %arg4[%c8, %c0_55, %c0_56] : memref<9x4x4xf32, #tpu.memory_space<vmem>>, vector<1x4x4xf32>
    %81 = vector.shape_cast %80 : vector<1x4x4xf32> to vector<4x4xf32>
    %cst_57 = arith.constant dense<0.000000e+00> : vector<144x4xf32>
    %82 = tpu.matmul %79, %81, %cst_57 {dimension_numbers = #tpu.dot_dimension_numbers<[1], [0], [0], [1], [0, 0, 1, 1], [], []>} : vector<144x4xf32>, vector<4x4xf32>, vector<144x4xf32> -> vector<144x4xf32>
    %83 = arith.addf %74, %82 : vector<144x4xf32>
    %c0_58 = arith.constant 0 : index
    %c0_59 = arith.constant 0 : index
    %84 = vector.load %arg5[%c0_58, %c0_59] : memref<1x4xf32, #tpu.memory_space<vmem>>, vector<1x4xf32>
    %85 = vector.broadcast %84 : vector<1x4xf32> to vector<144x4xf32>
    %86 = arith.addf %83, %85 : vector<144x4xf32>
    %cst_60 = arith.constant 0.000000e+00 : f32
    %87 = vector.broadcast %cst_60 : f32 to vector<144x4xf32>
    %88 = arith.maximumf %86, %87 : vector<144x4xf32>
    %89 = vector.extract_strided_slice %88 {offsets = [0, 0], sizes = [16, 4], strides = [1, 1]} : vector<144x4xf32> to vector<16x4xf32>
    %c0_61 = arith.constant 0 : index
    %c0_62 = arith.constant 0 : index
    %c0_63 = arith.constant 0 : index
    %c0_64 = arith.constant 0 : index
    %90 = vector.load %arg6[%c0_61, %c0_62, %c0_63, %c0_64] : memref<1x8x16x4xf32, #tpu.memory_space<vmem>>, vector<1x1x16x4xf32>
    %91 = vector.shape_cast %90 : vector<1x1x16x4xf32> to vector<16x4xf32>
    %92 = vector.shape_cast %89 : vector<16x4xf32> to vector<1x1x16x4xf32>
    tpu.vector_store %arg6[%c0_61, %c0_62, %c0_63, %c0_64], %92 {strides = array<i32>} : memref<1x8x16x4xf32, #tpu.memory_space<vmem>>, vector<1x1x16x4xf32>,
    %93 = vector.extract_strided_slice %88 {offsets = [18, 0], sizes = [16, 4], strides = [1, 1]} : vector<144x4xf32> to vector<16x4xf32>
    %c0_65 = arith.constant 0 : index
    %c1_66 = arith.constant 1 : index
    %c0_67 = arith.constant 0 : index
    %c0_68 = arith.constant 0 : index
    %94 = vector.load %arg6[%c0_65, %c1_66, %c0_67, %c0_68] : memref<1x8x16x4xf32, #tpu.memory_space<vmem>>, vector<1x1x16x4xf32>
    %95 = vector.shape_cast %94 : vector<1x1x16x4xf32> to vector<16x4xf32>
    %96 = vector.shape_cast %93 : vector<16x4xf32> to vector<1x1x16x4xf32>
    tpu.vector_store %arg6[%c0_65, %c1_66, %c0_67, %c0_68], %96 {strides = array<i32>} : memref<1x8x16x4xf32, #tpu.memory_space<vmem>>, vector<1x1x16x4xf32>,
    %97 = vector.extract_strided_slice %88 {offsets = [36, 0], sizes = [16, 4], strides = [1, 1]} : vector<144x4xf32> to vector<16x4xf32>
    %c0_69 = arith.constant 0 : index
    %c2_70 = arith.constant 2 : index
    %c0_71 = arith.constant 0 : index
    %c0_72 = arith.constant 0 : index
    %98 = vector.load %arg6[%c0_69, %c2_70, %c0_71, %c0_72] : memref<1x8x16x4xf32, #tpu.memory_space<vmem>>, vector<1x1x16x4xf32>
    %99 = vector.shape_cast %98 : vector<1x1x16x4xf32> to vector<16x4xf32>
    %100 = vector.shape_cast %97 : vector<16x4xf32> to vector<1x1x16x4xf32>
    tpu.vector_store %arg6[%c0_69, %c2_70, %c0_71, %c0_72], %100 {strides = array<i32>} : memref<1x8x16x4xf32, #tpu.memory_space<vmem>>, vector<1x1x16x4xf32>,
    %101 = vector.extract_strided_slice %88 {offsets = [54, 0], sizes = [16, 4], strides = [1, 1]} : vector<144x4xf32> to vector<16x4xf32>
    %c0_73 = arith.constant 0 : index
    %c3_74 = arith.constant 3 : index
    %c0_75 = arith.constant 0 : index
    %c0_76 = arith.constant 0 : index
    %102 = vector.load %arg6[%c0_73, %c3_74, %c0_75, %c0_76] : memref<1x8x16x4xf32, #tpu.memory_space<vmem>>, vector<1x1x16x4xf32>
    %103 = vector.shape_cast %102 : vector<1x1x16x4xf32> to vector<16x4xf32>
    %104 = vector.shape_cast %101 : vector<16x4xf32> to vector<1x1x16x4xf32>
    tpu.vector_store %arg6[%c0_73, %c3_74, %c0_75, %c0_76], %104 {strides = array<i32>} : memref<1x8x16x4xf32, #tpu.memory_space<vmem>>, vector<1x1x16x4xf32>,
    %105 = vector.extract_strided_slice %88 {offsets = [72, 0], sizes = [16, 4], strides = [1, 1]} : vector<144x4xf32> to vector<16x4xf32>
    %c0_77 = arith.constant 0 : index
    %c4_78 = arith.constant 4 : index
    %c0_79 = arith.constant 0 : index
    %c0_80 = arith.constant 0 : index
    %106 = vector.load %arg6[%c0_77, %c4_78, %c0_79, %c0_80] : memref<1x8x16x4xf32, #tpu.memory_space<vmem>>, vector<1x1x16x4xf32>
    %107 = vector.shape_cast %106 : vector<1x1x16x4xf32> to vector<16x4xf32>
    %108 = vector.shape_cast %105 : vector<16x4xf32> to vector<1x1x16x4xf32>
    tpu.vector_store %arg6[%c0_77, %c4_78, %c0_79, %c0_80], %108 {strides = array<i32>} : memref<1x8x16x4xf32, #tpu.memory_space<vmem>>, vector<1x1x16x4xf32>,
    %109 = vector.extract_strided_slice %88 {offsets = [90, 0], sizes = [16, 4], strides = [1, 1]} : vector<144x4xf32> to vector<16x4xf32>
    %c0_81 = arith.constant 0 : index
    %c5_82 = arith.constant 5 : index
    %c0_83 = arith.constant 0 : index
    %c0_84 = arith.constant 0 : index
    %110 = vector.load %arg6[%c0_81, %c5_82, %c0_83, %c0_84] : memref<1x8x16x4xf32, #tpu.memory_space<vmem>>, vector<1x1x16x4xf32>
    %111 = vector.shape_cast %110 : vector<1x1x16x4xf32> to vector<16x4xf32>
    %112 = vector.shape_cast %109 : vector<16x4xf32> to vector<1x1x16x4xf32>
    tpu.vector_store %arg6[%c0_81, %c5_82, %c0_83, %c0_84], %112 {strides = array<i32>} : memref<1x8x16x4xf32, #tpu.memory_space<vmem>>, vector<1x1x16x4xf32>,
    %113 = vector.extract_strided_slice %88 {offsets = [108, 0], sizes = [16, 4], strides = [1, 1]} : vector<144x4xf32> to vector<16x4xf32>
    %c0_85 = arith.constant 0 : index
    %c6_86 = arith.constant 6 : index
    %c0_87 = arith.constant 0 : index
    %c0_88 = arith.constant 0 : index
    %114 = vector.load %arg6[%c0_85, %c6_86, %c0_87, %c0_88] : memref<1x8x16x4xf32, #tpu.memory_space<vmem>>, vector<1x1x16x4xf32>
    %115 = vector.shape_cast %114 : vector<1x1x16x4xf32> to vector<16x4xf32>
    %116 = vector.shape_cast %113 : vector<16x4xf32> to vector<1x1x16x4xf32>
    tpu.vector_store %arg6[%c0_85, %c6_86, %c0_87, %c0_88], %116 {strides = array<i32>} : memref<1x8x16x4xf32, #tpu.memory_space<vmem>>, vector<1x1x16x4xf32>,
    %117 = vector.extract_strided_slice %88 {offsets = [126, 0], sizes = [16, 4], strides = [1, 1]} : vector<144x4xf32> to vector<16x4xf32>
    %c0_89 = arith.constant 0 : index
    %c7_90 = arith.constant 7 : index
    %c0_91 = arith.constant 0 : index
    %c0_92 = arith.constant 0 : index
    %118 = vector.load %arg6[%c0_89, %c7_90, %c0_91, %c0_92] : memref<1x8x16x4xf32, #tpu.memory_space<vmem>>, vector<1x1x16x4xf32>
    %119 = vector.shape_cast %118 : vector<1x1x16x4xf32> to vector<16x4xf32>
    %120 = vector.shape_cast %117 : vector<16x4xf32> to vector<1x1x16x4xf32>
    tpu.vector_store %arg6[%c0_89, %c7_90, %c0_91, %c0_92], %120 {strides = array<i32>} : memref<1x8x16x4xf32, #tpu.memory_space<vmem>>, vector<1x1x16x4xf32>,
    return
  }
  func.func @transform_0(%arg0: i32, %arg1: i32, %arg2: i32) -> (i32, i32, i32) {
    %c0_i32 = arith.constant 0 : i32
    %c0_i32_0 = arith.constant 0 : i32
    %c0_i32_1 = arith.constant 0 : i32
    return %arg0, %c0_i32, %c0_i32_0 : i32, i32, i32
  }
  func.func @transform_1(%arg0: i32, %arg1: i32, %arg2: i32) -> (i32, i32, i32) {
    %c0_i32 = arith.constant 0 : i32
    %c0_i32_0 = arith.constant 0 : i32
    %c0_i32_1 = arith.constant 0 : i32
    return %c0_i32, %c0_i32_0, %arg2 : i32, i32, i32
  }
  func.func @transform_2(%arg0: i32, %arg1: i32, %arg2: i32) -> (i32, i32) {
    %c0_i32 = arith.constant 0 : i32
    %c0_i32_0 = arith.constant 0 : i32
    return %c0_i32, %arg2 : i32, i32
  }
  func.func @transform_3(%arg0: i32, %arg1: i32, %arg2: i32) -> (i32, i32, i32, i32) {
    %c0_i32 = arith.constant 0 : i32
    %c0_i32_0 = arith.constant 0 : i32
    return %arg0, %arg1, %c0_i32, %arg2 : i32, i32, i32, i32
  }
}

</mosaic_0001>

<llo_original>
// kernel: tpu_custom_call.1
$region0: #{tpu_custom_call.1}
  #allocation0 [shape = 'u32[]', space=smem, size = 0x4, offset = 0x4, fixed_abs, tag = 'smem constant byte address 0x4 - core index']
  #allocation1 [shape = 'u32[144,128]{1,0:T(1,128)}', space=vmem, size = 0x12000, scoped, tag = 'internal scratch']
  %s0 = inlined_call_operand.vmem [shape: f32[2,342,4], index: 0, kind: input, shape index: {}]
  %s1 = inlined_call_operand.vmem [shape: f32[9,4,4], index: 1, kind: input, shape index: {}]
  %s2 = inlined_call_operand.vmem [shape: f32[1,4], index: 2, kind: input, shape index: {}]
  %s3 = inlined_call_operand.vmem [shape: f32[2,16,16,4], index: 3, kind: output, shape index: {}]
  %s4 = sld [smem:[#allocation0]]
  $region45: #{tpu_custom_call.1} parent=0
    _
  %s6 = ssub.s32 1, %s4
  %s7 = scalar_select 0, %s6, %s4
  loop: start=0, step=1, limit=6
  $region2: #{tpu_custom_call.1} parent=0 // loop_pre_header
    _
  $region3: #{tpu_custom_call.1} parent=0 // loop_header
    %s9 = sphi 0, %s13
    %p10 = scmp.ge.s32.totalorder %s9, 6
    %s16 = sphi 0, %s35
    %s17 = sphi 0, %s31
    %s18 = sphi 0, %s27
    %s19 = sphi 0, %s16
    %s20 = sphi 0, %s17
    %s21 = sphi 0, %s18
    %s22 = sphi 0, %s19
    %s23 = sphi 0, %s20
    %s24 = sphi 0, %s21
    %s38 = sphi 0, %s40
    %s41 = sphi 0, %s38
    %s42 = sphi 0, %s41
    %s58 = sphi 0, %s42
    %s64 = sphi 0, %s66
    %s67 = sphi 0, %s64
    %s68 = sphi 0, %s67
    %s84 = sphi 0, %s68
    %s90 = sphi 0, %s92
    %s93 = sphi 0, %s90
    %s94 = sphi 0, %s93
    %s110 = sphi 0, %s94
    %s120 = sphi 0, %s122
    %s123 = sphi 0, %s120
    %s124 = sphi 0, %s123
    %s140 = sphi 0, %s124
  $region4: #{tpu_custom_call.1} parent=0 // loop_header_branch
    %12 = sbr.rel (%p10) target = $region8
  $region5: #{tpu_custom_call.1} parent=0 // loop_body
    %s14 = ssub.s32 %s9, 1
    %s15 = ssub.s32 %s9, 2
    %s25 = sadd.s32 1, %s18
    %p26 = scmp.ge.s32.totalorder %s25, 1
    %s27 = scalar_select %p26, 0, %s25
    %s28 = sadd.s32 1, %s17
    %s29 = scalar_select %p26, %s28, %s17
    %p30 = scmp.ge.s32.totalorder %s29, 2
    %s31 = scalar_select %p30, 0, %s29
    %s32 = sadd.s32 1, %s16
    %s33 = scalar_select %p30, %s32, %s16
    %p34 = scmp.ge.s32.totalorder %s33, 2
    %s35 = scalar_select %p34, 0, %s33
    %s36 = ssub.s32 %s16, %s35
    %p37 = scmp.eq.s32.totalorder %s36, 0
    %s39 = sadd.s32 %s38, 1
    %s40 = scalar_select %p37, %s38, %s39
    %p43 = pneg %p37
    %p44 = scmp.eq.s32.totalorder %s9, 3
    %p45 = por %p43, %p44
    %p46 = scmp.ne.s32.totalorder %s38, %s41
    %p47 = scmp.eq.s32.totalorder %s9, 0
    %p48 = por %p46, %p47
    %p49 = scmp.ne.s32.totalorder %s38, %s41
    %p50 = scmp.eq.s32.totalorder %s14, 3
    %p51 = por %p49, %p50
    %p52 = scmp.ne.s32.totalorder %s41, %s42
    %p53 = scmp.eq.s32.totalorder %s14, 0
    %p54 = por %p52, %p53
    %p55 = scmp.ne.s32.totalorder %s41, %s42
    %p56 = scmp.eq.s32.totalorder %s15, 3
    %p57 = por %p55, %p56
    %p59 = scmp.ne.s32.totalorder %s42, %s58
    %p60 = scmp.eq.s32.totalorder %s15, 0
    %p61 = por %p59, %p60
    %s62 = ssub.s32 %s18, %s27
    %p63 = scmp.eq.s32.totalorder %s62, 0
    %s65 = sadd.s32 %s64, 1
    %s66 = scalar_select %p63, %s64, %s65
    %p69 = pneg %p63
    %p70 = scmp.eq.s32.totalorder %s9, 3
    %p71 = por %p69, %p70
    %p72 = scmp.ne.s32.totalorder %s64, %s67
    %p73 = scmp.eq.s32.totalorder %s9, 0
    %p74 = por %p72, %p73
    %p75 = scmp.ne.s32.totalorder %s64, %s67
    %p76 = scmp.eq.s32.totalorder %s14, 3
    %p77 = por %p75, %p76
    %p78 = scmp.ne.s32.totalorder %s67, %s68
    %p79 = scmp.eq.s32.totalorder %s14, 0
    %p80 = por %p78, %p79
    %p81 = scmp.ne.s32.totalorder %s67, %s68
    %p82 = scmp.eq.s32.totalorder %s15, 3
    %p83 = por %p81, %p82
    %p85 = scmp.ne.s32.totalorder %s68, %s84
    %p86 = scmp.eq.s32.totalorder %s15, 0
    %p87 = por %p85, %p86
    %s88 = ssub.s32 %s18, %s27
    %p89 = scmp.eq.s32.totalorder %s88, 0
    %s91 = sadd.s32 %s90, 1
    %s92 = scalar_select %p89, %s90, %s91
    %p95 = pneg %p89
    %p96 = scmp.eq.s32.totalorder %s9, 3
    %p97 = por %p95, %p96
    %p98 = scmp.ne.s32.totalorder %s90, %s93
    %p99 = scmp.eq.s32.totalorder %s9, 0
    %p100 = por %p98, %p99
    %p101 = scmp.ne.s32.totalorder %s90, %s93
    %p102 = scmp.eq.s32.totalorder %s14, 3
    %p103 = por %p101, %p102
    %p104 = scmp.ne.s32.totalorder %s93, %s94
    %p105 = scmp.eq.s32.totalorder %s14, 0
    %p106 = por %p104, %p105
    %p107 = scmp.ne.s32.totalorder %s93, %s94
    %p108 = scmp.eq.s32.totalorder %s15, 3
    %p109 = por %p107, %p108
    %p111 = scmp.ne.s32.totalorder %s94, %s110
    %p112 = scmp.eq.s32.totalorder %s15, 0
    %p113 = por %p111, %p112
    %s114 = ssub.s32 %s16, %s35
    %s115 = ssub.s32 %s17, %s31
    %s116 = sor.u32 %s114, %s115
    %s117 = ssub.s32 %s18, %s27
    %s118 = sor.u32 %s116, %s117
    %p119 = scmp.eq.s32.totalorder %s118, 0
    %s121 = sadd.s32 %s120, 1
    %s122 = scalar_select %p119, %s120, %s121
    %p125 = pneg %p119
    %p126 = scmp.eq.s32.totalorder %s9, 3
    %p127 = por %p125, %p126
    %p128 = scmp.ne.s32.totalorder %s120, %s123
    %p129 = scmp.eq.s32.totalorder %s9, 0
    %p130 = por %p128, %p129
    %p131 = scmp.ne.s32.totalorder %s120, %s123
    %p132 = scmp.eq.s32.totalorder %s14, 3
    %p133 = por %p131, %p132
    %p134 = scmp.ne.s32.totalorder %s123, %s124
    %p135 = scmp.eq.s32.totalorder %s14, 0
    %p136 = por %p134, %p135
    %p137 = scmp.ne.s32.totalorder %s123, %s124
    %p138 = scmp.eq.s32.totalorder %s15, 3
    %p139 = por %p137, %p138
    %p141 = scmp.ne.s32.totalorder %s124, %s140
    %p142 = scmp.eq.s32.totalorder %s15, 0
    %p143 = por %p141, %p142
    %p144 = scmp.le.s32.totalorder 1, %s9
    %p145 = scmp.lt.s32.totalorder %s9, 5
    %p146 = pnand %p144, %p145
    %p147 = pneg %p146
    // Predicated region
    $region9: #{tpu_custom_call.1} parent=5 // pred_check
      _
    $region10: #{tpu_custom_call.1} parent=5 // pred_check_branch
      %149 = sbr.rel (%p146) target = $region12
    $region11: #{tpu_custom_call.1} parent=5 // pred_region
      %s150 = ssub.s32 %s9, 1
      // Predicated region
      $region13: #{tpu_custom_call.1} parent=11 // pred_check
        %p151 = pneg %p80
      $region14: #{tpu_custom_call.1} parent=11 // pred_check_branch
        %153 = sbr.rel (%p151) target = $region16
      $region15: #{tpu_custom_call.1} parent=11 // pred_region
        %p154 = scmp.lt.s32.totalorder %s21, 0
        %s155 = scalar_select %p154, %s21, 0
        %s156 = smul.addr %s155, 4
        %s157 = scalar_lea.vmem %s1, %s156
      $region16: #{tpu_custom_call.1} parent=11 // pred_fallthru
        _
      // Predicated region
      $region17: #{tpu_custom_call.1} parent=11 // pred_check
        %p158 = pneg %p106
      $region18: #{tpu_custom_call.1} parent=11 // pred_check_branch
        %160 = sbr.rel (%p158) target = $region20
      $region19: #{tpu_custom_call.1} parent=11 // pred_region
        %p161 = scmp.lt.s32.totalorder %s21, 0
        %s162 = scalar_select %p161, %s21, 0
        %s163 = scalar_lea.vmem %s2, %s162
      $region20: #{tpu_custom_call.1} parent=11 // pred_fallthru
        _
    $region12: #{tpu_custom_call.1} parent=5 // pred_fallthru
      _
    %p164 = scmp.lt.s32.totalorder %s9, 4
    // Predicated region
    $region21: #{tpu_custom_call.1} parent=5 // pred_check
      %p165 = pneg %p164
    $region22: #{tpu_custom_call.1} parent=5 // pred_check_branch
      %167 = sbr.rel (%p165) target = $region24
    $region23: #{tpu_custom_call.1} parent=5 // pred_region
      // Predicated region
      $region25: #{tpu_custom_call.1} parent=23 // pred_check
        %p168 = pneg %p48
      $region26: #{tpu_custom_call.1} parent=23 // pred_check_branch
        %170 = sbr.rel (%p168) target = $region28
      $region27: #{tpu_custom_call.1} parent=23 // pred_region
        %p171 = scmp.lt.s32.totalorder %s16, 1
        %s172 = scalar_select %p171, %s16, 1
        %s173 = smul.addr %s172, 43
        %s174 = smul.addr %s173, 8
        %s175 = scalar_lea.vmem %s0, %s174
      $region28: #{tpu_custom_call.1} parent=23 // pred_fallthru
        _
    $region24: #{tpu_custom_call.1} parent=5 // pred_fallthru
      _
    %p176 = scmp.le.s32.totalorder 1, %s9
    %p177 = scmp.lt.s32.totalorder %s9, 5
    %p178 = pnand %p176, %p177
    %p179 = pneg %p178
    // Predicated region
    $region29: #{tpu_custom_call.1} parent=5 // pred_check
      _
    $region30: #{tpu_custom_call.1} parent=5 // pred_check_branch
      %181 = sbr.rel (%p178) target = $region32
    $region31: #{tpu_custom_call.1} parent=5 // pred_region
      %s182 = ssub.s32 %s9, 1
      %p183 = scmp.lt.s32.totalorder %s19, 1
      %s184 = scalar_select %p183, %s19, 1
      %s185 = smul.addr %s184, 43
      %s186 = smul.addr %s185, 8
      %s187 = scalar_lea.vmem %s0, %s186
      %p188 = pneg %p54
      %p189 = pneg %p51
      %p190 = scmp.lt.s32.totalorder %s21, 0
      %s191 = scalar_select %p190, %s21, 0
      %s192 = smul.addr %s191, 4
      %s193 = scalar_lea.vmem %s1, %s192
      %p194 = pneg %p80
      %p195 = pneg %p77
      %p196 = scmp.lt.s32.totalorder %s21, 0
      %s197 = scalar_select %p196, %s21, 0
      %s198 = scalar_lea.vmem %s2, %s197
      %p199 = pneg %p106
      %p200 = pneg %p103
      %p201 = pneg %p136
      %p202 = pneg %p133
      %s203 = smul.u32 8, %s20
      %p204 = scmp.lt.s32.totalorder %s19, 1
      %s205 = scalar_select %p204, %s19, 1
      %p206 = scmp.lt.s32.totalorder %s203, 15
      %s207 = scalar_select %p206, %s203, 15
      %p208 = scmp.lt.s32.totalorder %s21, 0
      %s209 = scalar_select %p208, %s21, 0
      %s210 = smul.addr %s207, 2
      %s211 = sadd.s32 %s209, %s210
      %s212 = smul.addr %s205, 32
      %s213 = sadd.s32 %s211, %s212
      %s214 = smul.addr %s213, 8
      %s215 = scalar_lea.vmem %s3, %s214
      %p216 = scmp.lt.s32.totalorder %s19, 1
      %s217 = scalar_select %p216, %s19, 1
      %s218 = smul.addr %s217, 43
      %s219 = smul.addr %s218, 8
      %s220 = scalar_lea.vmem %s0, %s219
      %p221 = scmp.lt.s32.totalorder %s21, 0
      %s222 = scalar_select %p221, %s21, 0
      %s223 = smul.addr %s222, 4
      %s224 = scalar_lea.vmem %s1, %s223
      %p225 = scmp.lt.s32.totalorder %s21, 0
      %s226 = scalar_select %p225, %s21, 0
      %s227 = scalar_lea.vmem %s2, %s226
      %s228 = smul.u32 8, %s20
      %p229 = scmp.lt.s32.totalorder %s19, 1
      %s230 = scalar_select %p229, %s19, 1
      %p231 = scmp.lt.s32.totalorder %s228, 15
      %s232 = scalar_select %p231, %s228, 15
      %p233 = scmp.lt.s32.totalorder %s21, 0
      %s234 = scalar_select %p233, %s21, 0
      %s235 = smul.addr %s232, 2
      %s236 = sadd.s32 %s234, %s235
      %s237 = smul.addr %s230, 32
      %s238 = sadd.s32 %s236, %s237
      %s239 = smul.addr %s238, 8
      %s240 = scalar_lea.vmem %s3, %s239
      %s241 = smul.u32 8, %s20
      %s242 = smul.u32 %s20, 144
      %s243 = scalar_lea.vmem %s220, %s242
      %v244 = vld [vmem:[%s243] sm:$0xff]
      %v245 = vld [vmem:[%s243 + $0x8] sm:$0xff]
      %v246 = vld [vmem:[%s243 + $0x10] sm:$0xff]
      %v247 = vld [vmem:[%s243 + $0x18] sm:$0xff]
      %v248 = vld [vmem:[%s243 + $0x20] sm:$0xff]
      %v249 = vld [vmem:[%s243 + $0x28] sm:$0xff]
      %v250 = vld [vmem:[%s243 + $0x30] sm:$0xff]
      %v251 = vld [vmem:[%s243 + $0x38] sm:$0xff]
      %v252 = vld [vmem:[%s243 + $0x40] sm:$0xff]
      %v253 = vld [vmem:[%s243 + $0x48] sm:$0xff]
      %v254 = vld [vmem:[%s243 + $0x50] sm:$0xff]
      %v255 = vld [vmem:[%s243 + $0x58] sm:$0xff]
      %v256 = vld [vmem:[%s243 + $0x60] sm:$0xff]
      %v257 = vld [vmem:[%s243 + $0x68] sm:$0xff]
      %v258 = vld [vmem:[%s243 + $0x70] sm:$0xff]
      %v259 = vld [vmem:[%s243 + $0x78] sm:$0xff]
      %v260 = vld [vmem:[%s243 + $0x80] sm:$0xff]
      %v261 = vld [vmem:[%s243 + $0x88] sm:$0xff]
      %v262 = vld [vmem:[%s224] sm:$0xf]
      %s263 = sadd.s32 %s242, 1
      %s264 = scalar_lea.vmem %s220, %s263
      %v265 = vld [vmem:[%s264] sm:$0xff]
      %v266 = vld [vmem:[%s264 + $0x8] sm:$0xff]
      %v267 = vld [vmem:[%s264 + $0x10] sm:$0xff]
      %v268 = vld [vmem:[%s264 + $0x18] sm:$0xff]
      %v269 = vld [vmem:[%s264 + $0x20] sm:$0xff]
      %v270 = vld [vmem:[%s264 + $0x28] sm:$0xff]
      %v271 = vld [vmem:[%s264 + $0x30] sm:$0xff]
      %v272 = vld [vmem:[%s264 + $0x38] sm:$0xff]
      %v273 = vld [vmem:[%s264 + $0x40] sm:$0xff]
      %v274 = vld [vmem:[%s264 + $0x48] sm:$0xff]
      %v275 = vld [vmem:[%s264 + $0x50] sm:$0xff]
      %v276 = vld [vmem:[%s264 + $0x58] sm:$0xff]
      %v277 = vld [vmem:[%s264 + $0x60] sm:$0xff]
      %v278 = vld [vmem:[%s264 + $0x68] sm:$0xff]
      %v279 = vld [vmem:[%s264 + $0x70] sm:$0xff]
      %v280 = vld [vmem:[%s264 + $0x78] sm:$0xff]
      %v281 = vld [vmem:[%s264 + $0x80] sm:$0xff]
      %v282 = vld [vmem:[%s264 + $0x88] sm:$0xff]
      %s283 = scalar_lea.vmem %s224, 4
      %v284 = vld [vmem:[%s283] sm:$0xf]
      %vm285 = vcmask 31744
      %v287 = vsel %vm285, %v265, 0
      %v290 = vsel %vm285, %v266, 0
      %v293 = vsel %vm285, %v267, 0
      %v296 = vsel %vm285, %v268, 0
      %v299 = vsel %vm285, %v269, 0
      %v302 = vsel %vm285, %v270, 0
      %v305 = vsel %vm285, %v271, 0
      %v308 = vsel %vm285, %v272, 0
      %v311 = vsel %vm285, %v273, 0
      %v314 = vsel %vm285, %v274, 0
      %v317 = vsel %vm285, %v275, 0
      %v320 = vsel %vm285, %v276, 0
      %v323 = vsel %vm285, %v277, 0
      %v326 = vsel %vm285, %v278, 0
      %v329 = vsel %vm285, %v279, 0
      %v332 = vsel %vm285, %v280, 0
      %v335 = vsel %vm285, %v281, 0
      %v338 = vsel %vm285, %v282, 0
      %vm340 = vcmask 1043456
      %v342 = vsel %vm340, %v284, 0
      %344 = vmatprep.subr.mxu0 0.0
      %345 = vmatpush1.msra.mxu0 0.0
      %346 = vmatprep.subr.mxu0 0.0
      %347 = vmatpush1.msra.mxu0 0.0
      %348 = vmatprep.subr.mxu0 0.0
      %349 = vmatpush1.msra.mxu0 0.0
      %350 = vmatprep.subr.mxu0 0.0
      %351 = vmatpush1.msra.mxu0 0.0
      %352 = vmatprep.subr.mxu0 0.0
      %353 = vmatpush1.msra.mxu0 0.0
      %354 = vmatprep.subr.mxu0 0.0
      %355 = vmatpush1.msra.mxu0 0.0
      %356 = vmatprep.subr.mxu0 0.0
      %357 = vmatpush1.msra.mxu0 0.0
      %358 = vmatprep.subr.mxu0 0.0
      %359 = vmatpush1.msra.mxu0 0.0
      %360 = vmatprep.subr.mxu0 0.0
      %361 = vmatpush1.msra.mxu0 0.0
      %362 = vmatprep.subr.mxu0 0.0
      %363 = vmatpush1.msra.mxu0 0.0
      %364 = vmatprep.subr.mxu0 0.0
      %365 = vmatpush1.msra.mxu0 0.0
      %366 = vmatprep.subr.mxu0 0.0
      %367 = vmatpush1.msra.mxu0 0.0
      %368 = vmatprep.subr.mxu0 0.0
      %369 = vmatpush1.msra.mxu0 0.0
      %370 = vmatprep.subr.mxu0 0.0
      %371 = vmatpush1.msra.mxu0 0.0
      %372 = vmatprep.subr.mxu0 0.0
      %373 = vmatpush1.msra.mxu0 0.0
      %374 = vmatprep.subr.mxu0 0.0
      %375 = vmatpush1.msra.mxu0 %v342
      %376 = vmatprep.subr.mxu0 0.0
      %377 = vmatpush2.msra.mxu0 0.0
      %378 = vmatprep.subr.mxu0 0.0
      %379 = vmatpush2.msra.mxu0 0.0
      %380 = vmatprep.subr.mxu0 0.0
      %381 = vmatpush2.msra.mxu0 0.0
      %382 = vmatprep.subr.mxu0 0.0
      %383 = vmatpush2.msra.mxu0 0.0
      %384 = vmatprep.subr.mxu0 0.0
      %385 = vmatpush2.msra.mxu0 0.0
      %386 = vmatprep.subr.mxu0 0.0
      %387 = vmatpush2.msra.mxu0 0.0
      %388 = vmatprep.subr.mxu0 0.0
      %389 = vmatpush2.msra.mxu0 0.0
      %390 = vmatprep.subr.mxu0 0.0
      %391 = vmatpush2.msra.mxu0 0.0
      %392 = vmatprep.subr.mxu0 0.0
      %393 = vmatpush2.msra.mxu0 0.0
      %394 = vmatprep.subr.mxu0 0.0
      %395 = vmatpush2.msra.mxu0 0.0
      %396 = vmatprep.subr.mxu0 0.0
      %397 = vmatpush2.msra.mxu0 0.0
      %398 = vmatprep.subr.mxu0 0.0
      %399 = vmatpush2.msra.mxu0 0.0
      %400 = vmatprep.subr.mxu0 0.0
      %401 = vmatpush2.msra.mxu0 0.0
      %402 = vmatprep.subr.mxu0 0.0
      %403 = vmatpush2.msra.mxu0 0.0
      %404 = vmatprep.subr.mxu0 0.0
      %405 = vmatpush2.msra.mxu0 0.0
      %406 = vmatprep.subr.mxu0 0.0
      %407 = vmatpush2.msra.mxu0 0.0
      %408 = vmatprep.mubr.f32.mxu0 0.0
      %409 = vmatmul.mubr.f32.gmra.mxu0 %v287
      %v410 = vpop.f32.mrf.mxu0
      %v411 = vadd.f32 0.0, %v410
      %v412 = vpop.f32.mrf.mxu0
      %413 = vmatprep.mubr.f32.mxu0 0.0
      %414 = vmatmul.mubr.f32.gmra.mxu0 %v290
      %v415 = vpop.f32.mrf.mxu0
      %v416 = vadd.f32 0.0, %v415
      %v417 = vpop.f32.mrf.mxu0
      %418 = vmatprep.mubr.f32.mxu0 0.0
      %419 = vmatmul.mubr.f32.gmra.mxu0 %v293
      %v420 = vpop.f32.mrf.mxu0
      %v421 = vadd.f32 0.0, %v420
      %v422 = vpop.f32.mrf.mxu0
      %423 = vmatprep.mubr.f32.mxu0 0.0
      %424 = vmatmul.mubr.f32.gmra.mxu0 %v296
      %v425 = vpop.f32.mrf.mxu0
      %v426 = vadd.f32 0.0, %v425
      %v427 = vpop.f32.mrf.mxu0
      %428 = vmatprep.mubr.f32.mxu0 0.0
      %429 = vmatmul.mubr.f32.gmra.mxu0 %v299
      %v430 = vpop.f32.mrf.mxu0
      %v431 = vadd.f32 0.0, %v430
      %v432 = vpop.f32.mrf.mxu0
      %433 = vmatprep.mubr.f32.mxu0 0.0
      %434 = vmatmul.mubr.f32.gmra.mxu0 %v302
      %v435 = vpop.f32.mrf.mxu0
      %v436 = vadd.f32 0.0, %v435
      %v437 = vpop.f32.mrf.mxu0
      %438 = vmatprep.mubr.f32.mxu0 0.0
      %439 = vmatmul.mubr.f32.gmra.mxu0 %v305
      %v440 = vpop.f32.mrf.mxu0
      %v441 = vadd.f32 0.0, %v440
      %v442 = vpop.f32.mrf.mxu0
      %443 = vmatprep.mubr.f32.mxu0 0.0
      %444 = vmatmul.mubr.f32.gmra.mxu0 %v308
      %v445 = vpop.f32.mrf.mxu0
      %v446 = vadd.f32 0.0, %v445
      %v447 = vpop.f32.mrf.mxu0
      %448 = vmatprep.mubr.f32.mxu0 0.0
      %449 = vmatmul.mubr.f32.gmra.mxu0 %v311
      %v450 = vpop.f32.mrf.mxu0
      %v451 = vadd.f32 0.0, %v450
      %v452 = vpop.f32.mrf.mxu0
      %453 = vmatprep.mubr.f32.mxu0 0.0
      %454 = vmatmul.mubr.f32.gmra.mxu0 %v314
      %v455 = vpop.f32.mrf.mxu0
      %v456 = vadd.f32 0.0, %v455
      %v457 = vpop.f32.mrf.mxu0
      %458 = vmatprep.mubr.f32.mxu0 0.0
      %459 = vmatmul.mubr.f32.gmra.mxu0 %v317
      %v460 = vpop.f32.mrf.mxu0
      %v461 = vadd.f32 0.0, %v460
      %v462 = vpop.f32.mrf.mxu0
      %463 = vmatprep.mubr.f32.mxu0 0.0
      %464 = vmatmul.mubr.f32.gmra.mxu0 %v320
      %v465 = vpop.f32.mrf.mxu0
      %v466 = vadd.f32 0.0, %v465
      %v467 = vpop.f32.mrf.mxu0
      %468 = vmatprep.mubr.f32.mxu0 0.0
      %469 = vmatmul.mubr.f32.gmra.mxu0 %v323
      %v470 = vpop.f32.mrf.mxu0
      %v471 = vadd.f32 0.0, %v470
      %v472 = vpop.f32.mrf.mxu0
      %473 = vmatprep.mubr.f32.mxu0 0.0
      %474 = vmatmul.mubr.f32.gmra.mxu0 %v326
      %v475 = vpop.f32.mrf.mxu0
      %v476 = vadd.f32 0.0, %v475
      %v477 = vpop.f32.mrf.mxu0
      %478 = vmatprep.mubr.f32.mxu0 0.0
      %479 = vmatmul.mubr.f32.gmra.mxu0 %v329
      %v480 = vpop.f32.mrf.mxu0
      %v481 = vadd.f32 0.0, %v480
      %v482 = vpop.f32.mrf.mxu0
      %483 = vmatprep.mubr.f32.mxu0 0.0
      %484 = vmatmul.mubr.f32.gmra.mxu0 %v332
      %v485 = vpop.f32.mrf.mxu0
      %v486 = vadd.f32 0.0, %v485
      %v487 = vpop.f32.mrf.mxu0
      %488 = vmatprep.mubr.f32.mxu0 0.0
      %489 = vmatmul.mubr.f32.gmra.mxu0 %v335
      %v490 = vpop.f32.mrf.mxu0
      %v491 = vadd.f32 0.0, %v490
      %v492 = vpop.f32.mrf.mxu0
      %493 = vmatprep.mubr.f32.mxu0 0.0
      %494 = vmatmul.mubr.f32.gmra.mxu0 %v338
      %v495 = vpop.f32.mrf.mxu0
      %v496 = vadd.f32 0.0, %v495
      %v497 = vpop.f32.mrf.mxu0
      %498 = vdwg.mxu0
      %v500 = vsel %vm285, %v244, 0
      %v503 = vsel %vm285, %v245, 0
      %v506 = vsel %vm285, %v246, 0
      %v509 = vsel %vm285, %v247, 0
      %v512 = vsel %vm285, %v248, 0
      %v515 = vsel %vm285, %v249, 0
      %v518 = vsel %vm285, %v250, 0
      %v521 = vsel %vm285, %v251, 0
      %v524 = vsel %vm285, %v252, 0
      %v527 = vsel %vm285, %v253, 0
      %v530 = vsel %vm285, %v254, 0
      %v533 = vsel %vm285, %v255, 0
      %v536 = vsel %vm285, %v256, 0
      %v539 = vsel %vm285, %v257, 0
      %v542 = vsel %vm285, %v258, 0
      %v545 = vsel %vm285, %v259, 0
      %v548 = vsel %vm285, %v260, 0
      %v551 = vsel %vm285, %v261, 0
      %v554 = vsel %vm340, %v262, 0
      %556 = vmatprep.subr.mxu0 0.0
      %557 = vmatpush1.msra.mxu0 0.0
      %558 = vmatprep.subr.mxu0 0.0
      %559 = vmatpush1.msra.mxu0 0.0
      %560 = vmatprep.subr.mxu0 0.0
      %561 = vmatpush1.msra.mxu0 0.0
      %562 = vmatprep.subr.mxu0 0.0
      %563 = vmatpush1.msra.mxu0 0.0
      %564 = vmatprep.subr.mxu0 0.0
      %565 = vmatpush1.msra.mxu0 0.0
      %566 = vmatprep.subr.mxu0 0.0
      %567 = vmatpush1.msra.mxu0 0.0
      %568 = vmatprep.subr.mxu0 0.0
      %569 = vmatpush1.msra.mxu0 0.0
      %570 = vmatprep.subr.mxu0 0.0
      %571 = vmatpush1.msra.mxu0 0.0
      %572 = vmatprep.subr.mxu0 0.0
      %573 = vmatpush1.msra.mxu0 0.0
      %574 = vmatprep.subr.mxu0 0.0
      %575 = vmatpush1.msra.mxu0 0.0
      %576 = vmatprep.subr.mxu0 0.0
      %577 = vmatpush1.msra.mxu0 0.0
      %578 = vmatprep.subr.mxu0 0.0
      %579 = vmatpush1.msra.mxu0 0.0
      %580 = vmatprep.subr.mxu0 0.0
      %581 = vmatpush1.msra.mxu0 0.0
      %582 = vmatprep.subr.mxu0 0.0
      %583 = vmatpush1.msra.mxu0 0.0
      %584 = vmatprep.subr.mxu0 0.0
      %585 = vmatpush1.msra.mxu0 0.0
      %586 = vmatprep.subr.mxu0 0.0
      %587 = vmatpush1.msra.mxu0 %v554
      %588 = vmatprep.subr.mxu0 0.0
      %589 = vmatpush2.msra.mxu0 0.0
      %590 = vmatprep.subr.mxu0 0.0
      %591 = vmatpush2.msra.mxu0 0.0
      %592 = vmatprep.subr.mxu0 0.0
      %593 = vmatpush2.msra.mxu0 0.0
      %594 = vmatprep.subr.mxu0 0.0
      %595 = vmatpush2.msra.mxu0 0.0
      %596 = vmatprep.subr.mxu0 0.0
      %597 = vmatpush2.msra.mxu0 0.0
      %598 = vmatprep.subr.mxu0 0.0
      %599 = vmatpush2.msra.mxu0 0.0
      %600 = vmatprep.subr.mxu0 0.0
      %601 = vmatpush2.msra.mxu0 0.0
      %602 = vmatprep.subr.mxu0 0.0
      %603 = vmatpush2.msra.mxu0 0.0
      %604 = vmatprep.subr.mxu0 0.0
      %605 = vmatpush2.msra.mxu0 0.0
      %606 = vmatprep.subr.mxu0 0.0
      %607 = vmatpush2.msra.mxu0 0.0
      %608 = vmatprep.subr.mxu0 0.0
      %609 = vmatpush2.msra.mxu0 0.0
      %610 = vmatprep.subr.mxu0 0.0
      %611 = vmatpush2.msra.mxu0 0.0
      %612 = vmatprep.subr.mxu0 0.0
      %613 = vmatpush2.msra.mxu0 0.0
      %614 = vmatprep.subr.mxu0 0.0
      %615 = vmatpush2.msra.mxu0 0.0
      %616 = vmatprep.subr.mxu0 0.0
      %617 = vmatpush2.msra.mxu0 0.0
      %618 = vmatprep.subr.mxu0 0.0
      %619 = vmatpush2.msra.mxu0 0.0
      %620 = vmatprep.mubr.f32.mxu0 0.0
      %621 = vmatmul.mubr.f32.gmra.mxu0 %v500
      %v622 = vpop.f32.mrf.mxu0
      %v623 = vadd.f32 %v411, %v622
      %v624 = vpop.f32.mrf.mxu0
      %625 = vmatprep.mubr.f32.mxu0 0.0
      %626 = vmatmul.mubr.f32.gmra.mxu0 %v503
      %v627 = vpop.f32.mrf.mxu0
      %v628 = vadd.f32 %v416, %v627
      %v629 = vpop.f32.mrf.mxu0
      %630 = vmatprep.mubr.f32.mxu0 0.0
      %631 = vmatmul.mubr.f32.gmra.mxu0 %v506
      %v632 = vpop.f32.mrf.mxu0
      %v633 = vadd.f32 %v421, %v632
      %v634 = vpop.f32.mrf.mxu0
      %635 = vmatprep.mubr.f32.mxu0 0.0
      %636 = vmatmul.mubr.f32.gmra.mxu0 %v509
      %v637 = vpop.f32.mrf.mxu0
      %v638 = vadd.f32 %v426, %v637
      %v639 = vpop.f32.mrf.mxu0
      %640 = vmatprep.mubr.f32.mxu0 0.0
      %641 = vmatmul.mubr.f32.gmra.mxu0 %v512
      %v642 = vpop.f32.mrf.mxu0
      %v643 = vadd.f32 %v431, %v642
      %v644 = vpop.f32.mrf.mxu0
      %645 = vmatprep.mubr.f32.mxu0 0.0
      %646 = vmatmul.mubr.f32.gmra.mxu0 %v515
      %v647 = vpop.f32.mrf.mxu0
      %v648 = vadd.f32 %v436, %v647
      %v649 = vpop.f32.mrf.mxu0
      %650 = vmatprep.mubr.f32.mxu0 0.0
      %651 = vmatmul.mubr.f32.gmra.mxu0 %v518
      %v652 = vpop.f32.mrf.mxu0
      %v653 = vadd.f32 %v441, %v652
      %v654 = vpop.f32.mrf.mxu0
      %655 = vmatprep.mubr.f32.mxu0 0.0
      %656 = vmatmul.mubr.f32.gmra.mxu0 %v521
      %v657 = vpop.f32.mrf.mxu0
      %v658 = vadd.f32 %v446, %v657
      %v659 = vpop.f32.mrf.mxu0
      %660 = vmatprep.mubr.f32.mxu0 0.0
      %661 = vmatmul.mubr.f32.gmra.mxu0 %v524
      %v662 = vpop.f32.mrf.mxu0
      %v663 = vadd.f32 %v451, %v662
      %v664 = vpop.f32.mrf.mxu0
      %665 = vmatprep.mubr.f32.mxu0 0.0
      %666 = vmatmul.mubr.f32.gmra.mxu0 %v527
      %v667 = vpop.f32.mrf.mxu0
      %v668 = vadd.f32 %v456, %v667
      %v669 = vpop.f32.mrf.mxu0
      %670 = vmatprep.mubr.f32.mxu0 0.0
      %671 = vmatmul.mubr.f32.gmra.mxu0 %v530
      %v672 = vpop.f32.mrf.mxu0
      %v673 = vadd.f32 %v461, %v672
      %v674 = vpop.f32.mrf.mxu0
      %675 = vmatprep.mubr.f32.mxu0 0.0
      %676 = vmatmul.mubr.f32.gmra.mxu0 %v533
      %v677 = vpop.f32.mrf.mxu0
      %v678 = vadd.f32 %v466, %v677
      %v679 = vpop.f32.mrf.mxu0
      %680 = vmatprep.mubr.f32.mxu0 0.0
      %681 = vmatmul.mubr.f32.gmra.mxu0 %v536
      %v682 = vpop.f32.mrf.mxu0
      %v683 = vadd.f32 %v471, %v682
      %v684 = vpop.f32.mrf.mxu0
      %685 = vmatprep.mubr.f32.mxu0 0.0
      %686 = vmatmul.mubr.f32.gmra.mxu0 %v539
      %v687 = vpop.f32.mrf.mxu0
      %v688 = vadd.f32 %v476, %v687
      %v689 = vpop.f32.mrf.mxu0
      %690 = vmatprep.mubr.f32.mxu0 0.0
      %691 = vmatmul.mubr.f32.gmra.mxu0 %v542
      %v692 = vpop.f32.mrf.mxu0
      %v693 = vadd.f32 %v481, %v692
      %v694 = vpop.f32.mrf.mxu0
      %695 = vmatprep.mubr.f32.mxu0 0.0
      %696 = vmatmul.mubr.f32.gmra.mxu0 %v545
      %v697 = vpop.f32.mrf.mxu0
      %v698 = vadd.f32 %v486, %v697
      %v699 = vpop.f32.mrf.mxu0
      %700 = vmatprep.mubr.f32.mxu0 0.0
      %701 = vmatmul.mubr.f32.gmra.mxu0 %v548
      %v702 = vpop.f32.mrf.mxu0
      %v703 = vadd.f32 %v491, %v702
      %v704 = vpop.f32.mrf.mxu0
      %705 = vmatprep.mubr.f32.mxu0 0.0
      %706 = vmatmul.mubr.f32.gmra.mxu0 %v551
      %v707 = vpop.f32.mrf.mxu0
      %v708 = vadd.f32 %v496, %v707
      %v709 = vpop.f32.mrf.mxu0
      %710 = vdwg.mxu0
      %s711 = sadd.s32 %s242, 2
      %s712 = scalar_lea.vmem %s220, %s711
      %v713 = vld [vmem:[%s712] sm:$0xff]
      %v714 = vld [vmem:[%s712 + $0x8] sm:$0xff]
      %v715 = vld [vmem:[%s712 + $0x10] sm:$0xff]
      %v716 = vld [vmem:[%s712 + $0x18] sm:$0xff]
      %v717 = vld [vmem:[%s712 + $0x20] sm:$0xff]
      %v718 = vld [vmem:[%s712 + $0x28] sm:$0xff]
      %v719 = vld [vmem:[%s712 + $0x30] sm:$0xff]
      %v720 = vld [vmem:[%s712 + $0x38] sm:$0xff]
      %v721 = vld [vmem:[%s712 + $0x40] sm:$0xff]
      %v722 = vld [vmem:[%s712 + $0x48] sm:$0xff]
      %v723 = vld [vmem:[%s712 + $0x50] sm:$0xff]
      %v724 = vld [vmem:[%s712 + $0x58] sm:$0xff]
      %v725 = vld [vmem:[%s712 + $0x60] sm:$0xff]
      %v726 = vld [vmem:[%s712 + $0x68] sm:$0xff]
      %v727 = vld [vmem:[%s712 + $0x70] sm:$0xff]
      %v728 = vld [vmem:[%s712 + $0x78] sm:$0xff]
      %v729 = vld [vmem:[%s712 + $0x80] sm:$0xff]
      %v730 = vld [vmem:[%s712 + $0x88] sm:$0xff]
      %s731 = scalar_lea.vmem %s224, 8
      %v732 = vld [vmem:[%s731] sm:$0xf]
      %v734 = vsel %vm285, %v713, 0
      %v737 = vsel %vm285, %v714, 0
      %v740 = vsel %vm285, %v715, 0
      %v743 = vsel %vm285, %v716, 0
      %v746 = vsel %vm285, %v717, 0
      %v749 = vsel %vm285, %v718, 0
      %v752 = vsel %vm285, %v719, 0
      %v755 = vsel %vm285, %v720, 0
      %v758 = vsel %vm285, %v721, 0
      %v761 = vsel %vm285, %v722, 0
      %v764 = vsel %vm285, %v723, 0
      %v767 = vsel %vm285, %v724, 0
      %v770 = vsel %vm285, %v725, 0
      %v773 = vsel %vm285, %v726, 0
      %v776 = vsel %vm285, %v727, 0
      %v779 = vsel %vm285, %v728, 0
      %v782 = vsel %vm285, %v729, 0
      %v785 = vsel %vm285, %v730, 0
      %v788 = vsel %vm340, %v732, 0
      %790 = vmatprep.subr.mxu0 0.0
      %791 = vmatpush1.msra.mxu0 0.0
      %792 = vmatprep.subr.mxu0 0.0
      %793 = vmatpush1.msra.mxu0 0.0
      %794 = vmatprep.subr.mxu0 0.0
      %795 = vmatpush1.msra.mxu0 0.0
      %796 = vmatprep.subr.mxu0 0.0
      %797 = vmatpush1.msra.mxu0 0.0
      %798 = vmatprep.subr.mxu0 0.0
      %799 = vmatpush1.msra.mxu0 0.0
      %800 = vmatprep.subr.mxu0 0.0
      %801 = vmatpush1.msra.mxu0 0.0
      %802 = vmatprep.subr.mxu0 0.0
      %803 = vmatpush1.msra.mxu0 0.0
      %804 = vmatprep.subr.mxu0 0.0
      %805 = vmatpush1.msra.mxu0 0.0
      %806 = vmatprep.subr.mxu0 0.0
      %807 = vmatpush1.msra.mxu0 0.0
      %808 = vmatprep.subr.mxu0 0.0
      %809 = vmatpush1.msra.mxu0 0.0
      %810 = vmatprep.subr.mxu0 0.0
      %811 = vmatpush1.msra.mxu0 0.0
      %812 = vmatprep.subr.mxu0 0.0
      %813 = vmatpush1.msra.mxu0 0.0
      %814 = vmatprep.subr.mxu0 0.0
      %815 = vmatpush1.msra.mxu0 0.0
      %816 = vmatprep.subr.mxu0 0.0
      %817 = vmatpush1.msra.mxu0 0.0
      %818 = vmatprep.subr.mxu0 0.0
      %819 = vmatpush1.msra.mxu0 0.0
      %820 = vmatprep.subr.mxu0 0.0
      %821 = vmatpush1.msra.mxu0 %v788
      %822 = vmatprep.subr.mxu0 0.0
      %823 = vmatpush2.msra.mxu0 0.0
      %824 = vmatprep.subr.mxu0 0.0
      %825 = vmatpush2.msra.mxu0 0.0
      %826 = vmatprep.subr.mxu0 0.0
      %827 = vmatpush2.msra.mxu0 0.0
      %828 = vmatprep.subr.mxu0 0.0
      %829 = vmatpush2.msra.mxu0 0.0
      %830 = vmatprep.subr.mxu0 0.0
      %831 = vmatpush2.msra.mxu0 0.0
      %832 = vmatprep.subr.mxu0 0.0
      %833 = vmatpush2.msra.mxu0 0.0
      %834 = vmatprep.subr.mxu0 0.0
      %835 = vmatpush2.msra.mxu0 0.0
      %836 = vmatprep.subr.mxu0 0.0
      %837 = vmatpush2.msra.mxu0 0.0
      %838 = vmatprep.subr.mxu0 0.0
      %839 = vmatpush2.msra.mxu0 0.0
      %840 = vmatprep.subr.mxu0 0.0
      %841 = vmatpush2.msra.mxu0 0.0
      %842 = vmatprep.subr.mxu0 0.0
      %843 = vmatpush2.msra.mxu0 0.0
      %844 = vmatprep.subr.mxu0 0.0
      %845 = vmatpush2.msra.mxu0 0.0
      %846 = vmatprep.subr.mxu0 0.0
      %847 = vmatpush2.msra.mxu0 0.0
      %848 = vmatprep.subr.mxu0 0.0
      %849 = vmatpush2.msra.mxu0 0.0
      %850 = vmatprep.subr.mxu0 0.0
      %851 = vmatpush2.msra.mxu0 0.0
      %852 = vmatprep.subr.mxu0 0.0
      %853 = vmatpush2.msra.mxu0 0.0
      %854 = vmatprep.mubr.f32.mxu0 0.0
      %855 = vmatmul.mubr.f32.gmra.mxu0 %v734
      %v856 = vpop.f32.mrf.mxu0
      %v857 = vadd.f32 0.0, %v856
      %v858 = vpop.f32.mrf.mxu0
      %859 = vmatprep.mubr.f32.mxu0 0.0
      %860 = vmatmul.mubr.f32.gmra.mxu0 %v737
      %v861 = vpop.f32.mrf.mxu0
      %v862 = vadd.f32 0.0, %v861
      %v863 = vpop.f32.mrf.mxu0
      %864 = vmatprep.mubr.f32.mxu0 0.0
      %865 = vmatmul.mubr.f32.gmra.mxu0 %v740
      %v866 = vpop.f32.mrf.mxu0
      %v867 = vadd.f32 0.0, %v866
      %v868 = vpop.f32.mrf.mxu0
      %869 = vmatprep.mubr.f32.mxu0 0.0
      %870 = vmatmul.mubr.f32.gmra.mxu0 %v743
      %v871 = vpop.f32.mrf.mxu0
      %v872 = vadd.f32 0.0, %v871
      %v873 = vpop.f32.mrf.mxu0
      %874 = vmatprep.mubr.f32.mxu0 0.0
      %875 = vmatmul.mubr.f32.gmra.mxu0 %v746
      %v876 = vpop.f32.mrf.mxu0
      %v877 = vadd.f32 0.0, %v876
      %v878 = vpop.f32.mrf.mxu0
      %879 = vmatprep.mubr.f32.mxu0 0.0
      %880 = vmatmul.mubr.f32.gmra.mxu0 %v749
      %v881 = vpop.f32.mrf.mxu0
      %v882 = vadd.f32 0.0, %v881
      %v883 = vpop.f32.mrf.mxu0
      %884 = vmatprep.mubr.f32.mxu0 0.0
      %885 = vmatmul.mubr.f32.gmra.mxu0 %v752
      %v886 = vpop.f32.mrf.mxu0
      %v887 = vadd.f32 0.0, %v886
      %v888 = vpop.f32.mrf.mxu0
      %889 = vmatprep.mubr.f32.mxu0 0.0
      %890 = vmatmul.mubr.f32.gmra.mxu0 %v755
      %v891 = vpop.f32.mrf.mxu0
      %v892 = vadd.f32 0.0, %v891
      %v893 = vpop.f32.mrf.mxu0
      %894 = vmatprep.mubr.f32.mxu0 0.0
      %895 = vmatmul.mubr.f32.gmra.mxu0 %v758
      %v896 = vpop.f32.mrf.mxu0
      %v897 = vadd.f32 0.0, %v896
      %v898 = vpop.f32.mrf.mxu0
      %899 = vmatprep.mubr.f32.mxu0 0.0
      %900 = vmatmul.mubr.f32.gmra.mxu0 %v761
      %v901 = vpop.f32.mrf.mxu0
      %v902 = vadd.f32 0.0, %v901
      %v903 = vpop.f32.mrf.mxu0
      %904 = vmatprep.mubr.f32.mxu0 0.0
      %905 = vmatmul.mubr.f32.gmra.mxu0 %v764
      %v906 = vpop.f32.mrf.mxu0
      %v907 = vadd.f32 0.0, %v906
      %v908 = vpop.f32.mrf.mxu0
      %909 = vmatprep.mubr.f32.mxu0 0.0
      %910 = vmatmul.mubr.f32.gmra.mxu0 %v767
      %v911 = vpop.f32.mrf.mxu0
      %v912 = vadd.f32 0.0, %v911
      %v913 = vpop.f32.mrf.mxu0
      %914 = vmatprep.mubr.f32.mxu0 0.0
      %915 = vmatmul.mubr.f32.gmra.mxu0 %v770
      %v916 = vpop.f32.mrf.mxu0
      %v917 = vadd.f32 0.0, %v916
      %v918 = vpop.f32.mrf.mxu0
      %919 = vmatprep.mubr.f32.mxu0 0.0
      %920 = vmatmul.mubr.f32.gmra.mxu0 %v773
      %v921 = vpop.f32.mrf.mxu0
      %v922 = vadd.f32 0.0, %v921
      %v923 = vpop.f32.mrf.mxu0
      %924 = vmatprep.mubr.f32.mxu0 0.0
      %925 = vmatmul.mubr.f32.gmra.mxu0 %v776
      %v926 = vpop.f32.mrf.mxu0
      %v927 = vadd.f32 0.0, %v926
      %v928 = vpop.f32.mrf.mxu0
      %929 = vmatprep.mubr.f32.mxu0 0.0
      %930 = vmatmul.mubr.f32.gmra.mxu0 %v779
      %v931 = vpop.f32.mrf.mxu0
      %v932 = vadd.f32 0.0, %v931
      %v933 = vpop.f32.mrf.mxu0
      %934 = vmatprep.mubr.f32.mxu0 0.0
      %935 = vmatmul.mubr.f32.gmra.mxu0 %v782
      %v936 = vpop.f32.mrf.mxu0
      %v937 = vadd.f32 0.0, %v936
      %v938 = vpop.f32.mrf.mxu0
      %939 = vmatprep.mubr.f32.mxu0 0.0
      %940 = vmatmul.mubr.f32.gmra.mxu0 %v785
      %v941 = vpop.f32.mrf.mxu0
      %v942 = vadd.f32 0.0, %v941
      %v943 = vpop.f32.mrf.mxu0
      %944 = vdwg.mxu0
      %v945 = vadd.f32 %v623, %v857
      %v946 = vadd.f32 %v628, %v862
      %v947 = vadd.f32 %v633, %v867
      %v948 = vadd.f32 %v638, %v872
      %v949 = vadd.f32 %v643, %v877
      %v950 = vadd.f32 %v648, %v882
      %v951 = vadd.f32 %v653, %v887
      %v952 = vadd.f32 %v658, %v892
      %v953 = vadd.f32 %v663, %v897
      %v954 = vadd.f32 %v668, %v902
      %v955 = vadd.f32 %v673, %v907
      %v956 = vadd.f32 %v678, %v912
      %v957 = vadd.f32 %v683, %v917
      %v958 = vadd.f32 %v688, %v922
      %v959 = vadd.f32 %v693, %v927
      %v960 = vadd.f32 %v698, %v932
      %v961 = vadd.f32 %v703, %v937
      %v962 = vadd.f32 %v708, %v942
      %s963 = sadd.s32 %s242, 18
      %s964 = scalar_lea.vmem %s220, %s963
      %v965 = vld [vmem:[%s964] sm:$0xff]
      %v966 = vld [vmem:[%s964 + $0x8] sm:$0xff]
      %v967 = vld [vmem:[%s964 + $0x10] sm:$0xff]
      %v968 = vld [vmem:[%s964 + $0x18] sm:$0xff]
      %v969 = vld [vmem:[%s964 + $0x20] sm:$0xff]
      %v970 = vld [vmem:[%s964 + $0x28] sm:$0xff]
      %v971 = vld [vmem:[%s964 + $0x30] sm:$0xff]
      %v972 = vld [vmem:[%s964 + $0x38] sm:$0xff]
      %v973 = vld [vmem:[%s964 + $0x40] sm:$0xff]
      %v974 = vld [vmem:[%s964 + $0x48] sm:$0xff]
      %v975 = vld [vmem:[%s964 + $0x50] sm:$0xff]
      %v976 = vld [vmem:[%s964 + $0x58] sm:$0xff]
      %v977 = vld [vmem:[%s964 + $0x60] sm:$0xff]
      %v978 = vld [vmem:[%s964 + $0x68] sm:$0xff]
      %v979 = vld [vmem:[%s964 + $0x70] sm:$0xff]
      %v980 = vld [vmem:[%s964 + $0x78] sm:$0xff]
      %v981 = vld [vmem:[%s964 + $0x80] sm:$0xff]
      %v982 = vld [vmem:[%s964 + $0x88] sm:$0xff]
      %s983 = scalar_lea.vmem %s224, 12
      %v984 = vld [vmem:[%s983] sm:$0xf]
      %v986 = vsel %vm285, %v965, 0
      %v989 = vsel %vm285, %v966, 0
      %v992 = vsel %vm285, %v967, 0
      %v995 = vsel %vm285, %v968, 0
      %v998 = vsel %vm285, %v969, 0
      %v1001 = vsel %vm285, %v970, 0
      %v1004 = vsel %vm285, %v971, 0
      %v1007 = vsel %vm285, %v972, 0
      %v1010 = vsel %vm285, %v973, 0
      %v1013 = vsel %vm285, %v974, 0
      %v1016 = vsel %vm285, %v975, 0
      %v1019 = vsel %vm285, %v976, 0
      %v1022 = vsel %vm285, %v977, 0
      %v1025 = vsel %vm285, %v978, 0
      %v1028 = vsel %vm285, %v979, 0
      %v1031 = vsel %vm285, %v980, 0
      %v1034 = vsel %vm285, %v981, 0
      %v1037 = vsel %vm285, %v982, 0
      %v1040 = vsel %vm340, %v984, 0
      %1042 = vmatprep.subr.mxu0 0.0
      %1043 = vmatpush1.msra.mxu0 0.0
      %1044 = vmatprep.subr.mxu0 0.0
      %1045 = vmatpush1.msra.mxu0 0.0
      %1046 = vmatprep.subr.mxu0 0.0
      %1047 = vmatpush1.msra.mxu0 0.0
      %1048 = vmatprep.subr.mxu0 0.0
      %1049 = vmatpush1.msra.mxu0 0.0
      %1050 = vmatprep.subr.mxu0 0.0
      %1051 = vmatpush1.msra.mxu0 0.0
      %1052 = vmatprep.subr.mxu0 0.0
      %1053 = vmatpush1.msra.mxu0 0.0
      %1054 = vmatprep.subr.mxu0 0.0
      %1055 = vmatpush1.msra.mxu0 0.0
      %1056 = vmatprep.subr.mxu0 0.0
      %1057 = vmatpush1.msra.mxu0 0.0
      %1058 = vmatprep.subr.mxu0 0.0
      %1059 = vmatpush1.msra.mxu0 0.0
      %1060 = vmatprep.subr.mxu0 0.0
      %1061 = vmatpush1.msra.mxu0 0.0
      %1062 = vmatprep.subr.mxu0 0.0
      %1063 = vmatpush1.msra.mxu0 0.0
      %1064 = vmatprep.subr.mxu0 0.0
      %1065 = vmatpush1.msra.mxu0 0.0
      %1066 = vmatprep.subr.mxu0 0.0
      %1067 = vmatpush1.msra.mxu0 0.0
      %1068 = vmatprep.subr.mxu0 0.0
      %1069 = vmatpush1.msra.mxu0 0.0
      %1070 = vmatprep.subr.mxu0 0.0
      %1071 = vmatpush1.msra.mxu0 0.0
      %1072 = vmatprep.subr.mxu0 0.0
      %1073 = vmatpush1.msra.mxu0 %v1040
      %1074 = vmatprep.subr.mxu0 0.0
      %1075 = vmatpush2.msra.mxu0 0.0
      %1076 = vmatprep.subr.mxu0 0.0
      %1077 = vmatpush2.msra.mxu0 0.0
      %1078 = vmatprep.subr.mxu0 0.0
      %1079 = vmatpush2.msra.mxu0 0.0
      %1080 = vmatprep.subr.mxu0 0.0
      %1081 = vmatpush2.msra.mxu0 0.0
      %1082 = vmatprep.subr.mxu0 0.0
      %1083 = vmatpush2.msra.mxu0 0.0
      %1084 = vmatprep.subr.mxu0 0.0
      %1085 = vmatpush2.msra.mxu0 0.0
      %1086 = vmatprep.subr.mxu0 0.0
      %1087 = vmatpush2.msra.mxu0 0.0
      %1088 = vmatprep.subr.mxu0 0.0
      %1089 = vmatpush2.msra.mxu0 0.0
      %1090 = vmatprep.subr.mxu0 0.0
      %1091 = vmatpush2.msra.mxu0 0.0
      %1092 = vmatprep.subr.mxu0 0.0
      %1093 = vmatpush2.msra.mxu0 0.0
      %1094 = vmatprep.subr.mxu0 0.0
      %1095 = vmatpush2.msra.mxu0 0.0
      %1096 = vmatprep.subr.mxu0 0.0
      %1097 = vmatpush2.msra.mxu0 0.0
      %1098 = vmatprep.subr.mxu0 0.0
      %1099 = vmatpush2.msra.mxu0 0.0
      %1100 = vmatprep.subr.mxu0 0.0
      %1101 = vmatpush2.msra.mxu0 0.0
      %1102 = vmatprep.subr.mxu0 0.0
      %1103 = vmatpush2.msra.mxu0 0.0
      %1104 = vmatprep.subr.mxu0 0.0
      %1105 = vmatpush2.msra.mxu0 0.0
      %1106 = vmatprep.mubr.f32.mxu0 0.0
      %1107 = vmatmul.mubr.f32.gmra.mxu0 %v986
      %v1108 = vpop.f32.mrf.mxu0
      %v1109 = vadd.f32 0.0, %v1108
      %v1110 = vpop.f32.mrf.mxu0
      %1111 = vmatprep.mubr.f32.mxu0 0.0
      %1112 = vmatmul.mubr.f32.gmra.mxu0 %v989
      %v1113 = vpop.f32.mrf.mxu0
      %v1114 = vadd.f32 0.0, %v1113
      %v1115 = vpop.f32.mrf.mxu0
      %1116 = vmatprep.mubr.f32.mxu0 0.0
      %1117 = vmatmul.mubr.f32.gmra.mxu0 %v992
      %v1118 = vpop.f32.mrf.mxu0
      %v1119 = vadd.f32 0.0, %v1118
      %v1120 = vpop.f32.mrf.mxu0
      %1121 = vmatprep.mubr.f32.mxu0 0.0
      %1122 = vmatmul.mubr.f32.gmra.mxu0 %v995
      %v1123 = vpop.f32.mrf.mxu0
      %v1124 = vadd.f32 0.0, %v1123
      %v1125 = vpop.f32.mrf.mxu0
      %1126 = vmatprep.mubr.f32.mxu0 0.0
      %1127 = vmatmul.mubr.f32.gmra.mxu0 %v998
      %v1128 = vpop.f32.mrf.mxu0
      %v1129 = vadd.f32 0.0, %v1128
      %v1130 = vpop.f32.mrf.mxu0
      %1131 = vmatprep.mubr.f32.mxu0 0.0
      %1132 = vmatmul.mubr.f32.gmra.mxu0 %v1001
      %v1133 = vpop.f32.mrf.mxu0
      %v1134 = vadd.f32 0.0, %v1133
      %v1135 = vpop.f32.mrf.mxu0
      %1136 = vmatprep.mubr.f32.mxu0 0.0
      %1137 = vmatmul.mubr.f32.gmra.mxu0 %v1004
      %v1138 = vpop.f32.mrf.mxu0
      %v1139 = vadd.f32 0.0, %v1138
      %v1140 = vpop.f32.mrf.mxu0
      %1141 = vmatprep.mubr.f32.mxu0 0.0
      %1142 = vmatmul.mubr.f32.gmra.mxu0 %v1007
      %v1143 = vpop.f32.mrf.mxu0
      %v1144 = vadd.f32 0.0, %v1143
      %v1145 = vpop.f32.mrf.mxu0
      %1146 = vmatprep.mubr.f32.mxu0 0.0
      %1147 = vmatmul.mubr.f32.gmra.mxu0 %v1010
      %v1148 = vpop.f32.mrf.mxu0
      %v1149 = vadd.f32 0.0, %v1148
      %v1150 = vpop.f32.mrf.mxu0
      %1151 = vmatprep.mubr.f32.mxu0 0.0
      %1152 = vmatmul.mubr.f32.gmra.mxu0 %v1013
      %v1153 = vpop.f32.mrf.mxu0
      %v1154 = vadd.f32 0.0, %v1153
      %v1155 = vpop.f32.mrf.mxu0
      %1156 = vmatprep.mubr.f32.mxu0 0.0
      %1157 = vmatmul.mubr.f32.gmra.mxu0 %v1016
      %v1158 = vpop.f32.mrf.mxu0
      %v1159 = vadd.f32 0.0, %v1158
      %v1160 = vpop.f32.mrf.mxu0
      %1161 = vmatprep.mubr.f32.mxu0 0.0
      %1162 = vmatmul.mubr.f32.gmra.mxu0 %v1019
      %v1163 = vpop.f32.mrf.mxu0
      %v1164 = vadd.f32 0.0, %v1163
      %v1165 = vpop.f32.mrf.mxu0
      %1166 = vmatprep.mubr.f32.mxu0 0.0
      %1167 = vmatmul.mubr.f32.gmra.mxu0 %v1022
      %v1168 = vpop.f32.mrf.mxu0
      %v1169 = vadd.f32 0.0, %v1168
      %v1170 = vpop.f32.mrf.mxu0
      %1171 = vmatprep.mubr.f32.mxu0 0.0
      %1172 = vmatmul.mubr.f32.gmra.mxu0 %v1025
      %v1173 = vpop.f32.mrf.mxu0
      %v1174 = vadd.f32 0.0, %v1173
      %v1175 = vpop.f32.mrf.mxu0
      %1176 = vmatprep.mubr.f32.mxu0 0.0
      %1177 = vmatmul.mubr.f32.gmra.mxu0 %v1028
      %v1178 = vpop.f32.mrf.mxu0
      %v1179 = vadd.f32 0.0, %v1178
      %v1180 = vpop.f32.mrf.mxu0
      %1181 = vmatprep.mubr.f32.mxu0 0.0
      %1182 = vmatmul.mubr.f32.gmra.mxu0 %v1031
      %v1183 = vpop.f32.mrf.mxu0
      %v1184 = vadd.f32 0.0, %v1183
      %v1185 = vpop.f32.mrf.mxu0
      %1186 = vmatprep.mubr.f32.mxu0 0.0
      %1187 = vmatmul.mubr.f32.gmra.mxu0 %v1034
      %v1188 = vpop.f32.mrf.mxu0
      %v1189 = vadd.f32 0.0, %v1188
      %v1190 = vpop.f32.mrf.mxu0
      %1191 = vmatprep.mubr.f32.mxu0 0.0
      %1192 = vmatmul.mubr.f32.gmra.mxu0 %v1037
      %v1193 = vpop.f32.mrf.mxu0
      %v1194 = vadd.f32 0.0, %v1193
      %v1195 = vpop.f32.mrf.mxu0
      %1196 = vdwg.mxu0
      %v1197 = vadd.f32 %v945, %v1109
      %v1198 = vadd.f32 %v946, %v1114
      %v1199 = vadd.f32 %v947, %v1119
      %v1200 = vadd.f32 %v948, %v1124
      %v1201 = vadd.f32 %v949, %v1129
      %v1202 = vadd.f32 %v950, %v1134
      %v1203 = vadd.f32 %v951, %v1139
      %v1204 = vadd.f32 %v952, %v1144
      %v1205 = vadd.f32 %v953, %v1149
      %v1206 = vadd.f32 %v954, %v1154
      %v1207 = vadd.f32 %v955, %v1159
      %v1208 = vadd.f32 %v956, %v1164
      %v1209 = vadd.f32 %v957, %v1169
      %v1210 = vadd.f32 %v958, %v1174
      %v1211 = vadd.f32 %v959, %v1179
      %v1212 = vadd.f32 %v960, %v1184
      %v1213 = vadd.f32 %v961, %v1189
      %v1214 = vadd.f32 %v962, %v1194
      %s1215 = sadd.s32 %s242, 19
      %s1216 = scalar_lea.vmem %s220, %s1215
      %v1217 = vld [vmem:[%s1216] sm:$0xff]
      %v1218 = vld [vmem:[%s1216 + $0x8] sm:$0xff]
      %v1219 = vld [vmem:[%s1216 + $0x10] sm:$0xff]
      %v1220 = vld [vmem:[%s1216 + $0x18] sm:$0xff]
      %v1221 = vld [vmem:[%s1216 + $0x20] sm:$0xff]
      %v1222 = vld [vmem:[%s1216 + $0x28] sm:$0xff]
      %v1223 = vld [vmem:[%s1216 + $0x30] sm:$0xff]
      %v1224 = vld [vmem:[%s1216 + $0x38] sm:$0xff]
      %v1225 = vld [vmem:[%s1216 + $0x40] sm:$0xff]
      %v1226 = vld [vmem:[%s1216 + $0x48] sm:$0xff]
      %v1227 = vld [vmem:[%s1216 + $0x50] sm:$0xff]
      %v1228 = vld [vmem:[%s1216 + $0x58] sm:$0xff]
      %v1229 = vld [vmem:[%s1216 + $0x60] sm:$0xff]
      %v1230 = vld [vmem:[%s1216 + $0x68] sm:$0xff]
      %v1231 = vld [vmem:[%s1216 + $0x70] sm:$0xff]
      %v1232 = vld [vmem:[%s1216 + $0x78] sm:$0xff]
      %v1233 = vld [vmem:[%s1216 + $0x80] sm:$0xff]
      %v1234 = vld [vmem:[%s1216 + $0x88] sm:$0xff]
      %s1235 = scalar_lea.vmem %s224, 16
      %v1236 = vld [vmem:[%s1235] sm:$0xf]
      %v1238 = vsel %vm285, %v1217, 0
      %v1241 = vsel %vm285, %v1218, 0
      %v1244 = vsel %vm285, %v1219, 0
      %v1247 = vsel %vm285, %v1220, 0
      %v1250 = vsel %vm285, %v1221, 0
      %v1253 = vsel %vm285, %v1222, 0
      %v1256 = vsel %vm285, %v1223, 0
      %v1259 = vsel %vm285, %v1224, 0
      %v1262 = vsel %vm285, %v1225, 0
      %v1265 = vsel %vm285, %v1226, 0
      %v1268 = vsel %vm285, %v1227, 0
      %v1271 = vsel %vm285, %v1228, 0
      %v1274 = vsel %vm285, %v1229, 0
      %v1277 = vsel %vm285, %v1230, 0
      %v1280 = vsel %vm285, %v1231, 0
      %v1283 = vsel %vm285, %v1232, 0
      %v1286 = vsel %vm285, %v1233, 0
      %v1289 = vsel %vm285, %v1234, 0
      %v1292 = vsel %vm340, %v1236, 0
      %1294 = vmatprep.subr.mxu0 0.0
      %1295 = vmatpush1.msra.mxu0 0.0
      %1296 = vmatprep.subr.mxu0 0.0
      %1297 = vmatpush1.msra.mxu0 0.0
      %1298 = vmatprep.subr.mxu0 0.0
      %1299 = vmatpush1.msra.mxu0 0.0
      %1300 = vmatprep.subr.mxu0 0.0
      %1301 = vmatpush1.msra.mxu0 0.0
      %1302 = vmatprep.subr.mxu0 0.0
      %1303 = vmatpush1.msra.mxu0 0.0
      %1304 = vmatprep.subr.mxu0 0.0
      %1305 = vmatpush1.msra.mxu0 0.0
      %1306 = vmatprep.subr.mxu0 0.0
      %1307 = vmatpush1.msra.mxu0 0.0
      %1308 = vmatprep.subr.mxu0 0.0
      %1309 = vmatpush1.msra.mxu0 0.0
      %1310 = vmatprep.subr.mxu0 0.0
      %1311 = vmatpush1.msra.mxu0 0.0
      %1312 = vmatprep.subr.mxu0 0.0
      %1313 = vmatpush1.msra.mxu0 0.0
      %1314 = vmatprep.subr.mxu0 0.0
      %1315 = vmatpush1.msra.mxu0 0.0
      %1316 = vmatprep.subr.mxu0 0.0
      %1317 = vmatpush1.msra.mxu0 0.0
      %1318 = vmatprep.subr.mxu0 0.0
      %1319 = vmatpush1.msra.mxu0 0.0
      %1320 = vmatprep.subr.mxu0 0.0
      %1321 = vmatpush1.msra.mxu0 0.0
      %1322 = vmatprep.subr.mxu0 0.0
      %1323 = vmatpush1.msra.mxu0 0.0
      %1324 = vmatprep.subr.mxu0 0.0
      %1325 = vmatpush1.msra.mxu0 %v1292
      %1326 = vmatprep.subr.mxu0 0.0
      %1327 = vmatpush2.msra.mxu0 0.0
      %1328 = vmatprep.subr.mxu0 0.0
      %1329 = vmatpush2.msra.mxu0 0.0
      %1330 = vmatprep.subr.mxu0 0.0
      %1331 = vmatpush2.msra.mxu0 0.0
      %1332 = vmatprep.subr.mxu0 0.0
      %1333 = vmatpush2.msra.mxu0 0.0
      %1334 = vmatprep.subr.mxu0 0.0
      %1335 = vmatpush2.msra.mxu0 0.0
      %1336 = vmatprep.subr.mxu0 0.0
      %1337 = vmatpush2.msra.mxu0 0.0
      %1338 = vmatprep.subr.mxu0 0.0
      %1339 = vmatpush2.msra.mxu0 0.0
      %1340 = vmatprep.subr.mxu0 0.0
      %1341 = vmatpush2.msra.mxu0 0.0
      %1342 = vmatprep.subr.mxu0 0.0
      %1343 = vmatpush2.msra.mxu0 0.0
      %1344 = vmatprep.subr.mxu0 0.0
      %1345 = vmatpush2.msra.mxu0 0.0
      %1346 = vmatprep.subr.mxu0 0.0
      %1347 = vmatpush2.msra.mxu0 0.0
      %1348 = vmatprep.subr.mxu0 0.0
      %1349 = vmatpush2.msra.mxu0 0.0
      %1350 = vmatprep.subr.mxu0 0.0
      %1351 = vmatpush2.msra.mxu0 0.0
      %1352 = vmatprep.subr.mxu0 0.0
      %1353 = vmatpush2.msra.mxu0 0.0
      %1354 = vmatprep.subr.mxu0 0.0
      %1355 = vmatpush2.msra.mxu0 0.0
      %1356 = vmatprep.subr.mxu0 0.0
      %1357 = vmatpush2.msra.mxu0 0.0
      %1358 = vmatprep.mubr.f32.mxu0 0.0
      %1359 = vmatmul.mubr.f32.gmra.mxu0 %v1238
      %v1360 = vpop.f32.mrf.mxu0
      %v1361 = vadd.f32 0.0, %v1360
      %v1362 = vpop.f32.mrf.mxu0
      %1363 = vmatprep.mubr.f32.mxu0 0.0
      %1364 = vmatmul.mubr.f32.gmra.mxu0 %v1241
      %v1365 = vpop.f32.mrf.mxu0
      %v1366 = vadd.f32 0.0, %v1365
      %v1367 = vpop.f32.mrf.mxu0
      %1368 = vmatprep.mubr.f32.mxu0 0.0
      %1369 = vmatmul.mubr.f32.gmra.mxu0 %v1244
      %v1370 = vpop.f32.mrf.mxu0
      %v1371 = vadd.f32 0.0, %v1370
      %v1372 = vpop.f32.mrf.mxu0
      %1373 = vmatprep.mubr.f32.mxu0 0.0
      %1374 = vmatmul.mubr.f32.gmra.mxu0 %v1247
      %v1375 = vpop.f32.mrf.mxu0
      %v1376 = vadd.f32 0.0, %v1375
      %v1377 = vpop.f32.mrf.mxu0
      %1378 = vmatprep.mubr.f32.mxu0 0.0
      %1379 = vmatmul.mubr.f32.gmra.mxu0 %v1250
      %v1380 = vpop.f32.mrf.mxu0
      %v1381 = vadd.f32 0.0, %v1380
      %v1382 = vpop.f32.mrf.mxu0
      %1383 = vmatprep.mubr.f32.mxu0 0.0
      %1384 = vmatmul.mubr.f32.gmra.mxu0 %v1253
      %v1385 = vpop.f32.mrf.mxu0
      %v1386 = vadd.f32 0.0, %v1385
      %v1387 = vpop.f32.mrf.mxu0
      %1388 = vmatprep.mubr.f32.mxu0 0.0
      %1389 = vmatmul.mubr.f32.gmra.mxu0 %v1256
      %v1390 = vpop.f32.mrf.mxu0
      %v1391 = vadd.f32 0.0, %v1390
      %v1392 = vpop.f32.mrf.mxu0
      %1393 = vmatprep.mubr.f32.mxu0 0.0
      %1394 = vmatmul.mubr.f32.gmra.mxu0 %v1259
      %v1395 = vpop.f32.mrf.mxu0
      %v1396 = vadd.f32 0.0, %v1395
      %v1397 = vpop.f32.mrf.mxu0
      %1398 = vmatprep.mubr.f32.mxu0 0.0
      %1399 = vmatmul.mubr.f32.gmra.mxu0 %v1262
      %v1400 = vpop.f32.mrf.mxu0
      %v1401 = vadd.f32 0.0, %v1400
      %v1402 = vpop.f32.mrf.mxu0
      %1403 = vmatprep.mubr.f32.mxu0 0.0
      %1404 = vmatmul.mubr.f32.gmra.mxu0 %v1265
      %v1405 = vpop.f32.mrf.mxu0
      %v1406 = vadd.f32 0.0, %v1405
      %v1407 = vpop.f32.mrf.mxu0
      %1408 = vmatprep.mubr.f32.mxu0 0.0
      %1409 = vmatmul.mubr.f32.gmra.mxu0 %v1268
      %v1410 = vpop.f32.mrf.mxu0
      %v1411 = vadd.f32 0.0, %v1410
      %v1412 = vpop.f32.mrf.mxu0
      %1413 = vmatprep.mubr.f32.mxu0 0.0
      %1414 = vmatmul.mubr.f32.gmra.mxu0 %v1271
      %v1415 = vpop.f32.mrf.mxu0
      %v1416 = vadd.f32 0.0, %v1415
      %v1417 = vpop.f32.mrf.mxu0
      %1418 = vmatprep.mubr.f32.mxu0 0.0
      %1419 = vmatmul.mubr.f32.gmra.mxu0 %v1274
      %v1420 = vpop.f32.mrf.mxu0
      %v1421 = vadd.f32 0.0, %v1420
      %v1422 = vpop.f32.mrf.mxu0
      %1423 = vmatprep.mubr.f32.mxu0 0.0
      %1424 = vmatmul.mubr.f32.gmra.mxu0 %v1277
      %v1425 = vpop.f32.mrf.mxu0
      %v1426 = vadd.f32 0.0, %v1425
      %v1427 = vpop.f32.mrf.mxu0
      %1428 = vmatprep.mubr.f32.mxu0 0.0
      %1429 = vmatmul.mubr.f32.gmra.mxu0 %v1280
      %v1430 = vpop.f32.mrf.mxu0
      %v1431 = vadd.f32 0.0, %v1430
      %v1432 = vpop.f32.mrf.mxu0
      %1433 = vmatprep.mubr.f32.mxu0 0.0
      %1434 = vmatmul.mubr.f32.gmra.mxu0 %v1283
      %v1435 = vpop.f32.mrf.mxu0
      %v1436 = vadd.f32 0.0, %v1435
      %v1437 = vpop.f32.mrf.mxu0
      %1438 = vmatprep.mubr.f32.mxu0 0.0
      %1439 = vmatmul.mubr.f32.gmra.mxu0 %v1286
      %v1440 = vpop.f32.mrf.mxu0
      %v1441 = vadd.f32 0.0, %v1440
      %v1442 = vpop.f32.mrf.mxu0
      %1443 = vmatprep.mubr.f32.mxu0 0.0
      %1444 = vmatmul.mubr.f32.gmra.mxu0 %v1289
      %v1445 = vpop.f32.mrf.mxu0
      %v1446 = vadd.f32 0.0, %v1445
      %v1447 = vpop.f32.mrf.mxu0
      %1448 = vdwg.mxu0
      %v1449 = vadd.f32 %v1197, %v1361
      %v1450 = vadd.f32 %v1198, %v1366
      %v1451 = vadd.f32 %v1199, %v1371
      %v1452 = vadd.f32 %v1200, %v1376
      %v1453 = vadd.f32 %v1201, %v1381
      %v1454 = vadd.f32 %v1202, %v1386
      %v1455 = vadd.f32 %v1203, %v1391
      %v1456 = vadd.f32 %v1204, %v1396
      %v1457 = vadd.f32 %v1205, %v1401
      %v1458 = vadd.f32 %v1206, %v1406
      %v1459 = vadd.f32 %v1207, %v1411
      %v1460 = vadd.f32 %v1208, %v1416
      %v1461 = vadd.f32 %v1209, %v1421
      %v1462 = vadd.f32 %v1210, %v1426
      %v1463 = vadd.f32 %v1211, %v1431
      %v1464 = vadd.f32 %v1212, %v1436
      %v1465 = vadd.f32 %v1213, %v1441
      %v1466 = vadd.f32 %v1214, %v1446
      %s1467 = sadd.s32 %s242, 20
      %s1468 = scalar_lea.vmem %s220, %s1467
      %v1469 = vld [vmem:[%s1468] sm:$0xff]
      %v1470 = vld [vmem:[%s1468 + $0x8] sm:$0xff]
      %v1471 = vld [vmem:[%s1468 + $0x10] sm:$0xff]
      %v1472 = vld [vmem:[%s1468 + $0x18] sm:$0xff]
      %v1473 = vld [vmem:[%s1468 + $0x20] sm:$0xff]
      %v1474 = vld [vmem:[%s1468 + $0x28] sm:$0xff]
      %v1475 = vld [vmem:[%s1468 + $0x30] sm:$0xff]
      %v1476 = vld [vmem:[%s1468 + $0x38] sm:$0xff]
      %v1477 = vld [vmem:[%s1468 + $0x40] sm:$0xff]
      %v1478 = vld [vmem:[%s1468 + $0x48] sm:$0xff]
      %v1479 = vld [vmem:[%s1468 + $0x50] sm:$0xff]
      %v1480 = vld [vmem:[%s1468 + $0x58] sm:$0xff]
      %v1481 = vld [vmem:[%s1468 + $0x60] sm:$0xff]
      %v1482 = vld [vmem:[%s1468 + $0x68] sm:$0xff]
      %v1483 = vld [vmem:[%s1468 + $0x70] sm:$0xff]
      %v1484 = vld [vmem:[%s1468 + $0x78] sm:$0xff]
      %v1485 = vld [vmem:[%s1468 + $0x80] sm:$0xff]
      %v1486 = vld [vmem:[%s1468 + $0x88] sm:$0xff]
      %s1487 = scalar_lea.vmem %s224, 20
      %v1488 = vld [vmem:[%s1487] sm:$0xf]
      %v1490 = vsel %vm285, %v1469, 0
      %v1493 = vsel %vm285, %v1470, 0
      %v1496 = vsel %vm285, %v1471, 0
      %v1499 = vsel %vm285, %v1472, 0
      %v1502 = vsel %vm285, %v1473, 0
      %v1505 = vsel %vm285, %v1474, 0
      %v1508 = vsel %vm285, %v1475, 0
      %v1511 = vsel %vm285, %v1476, 0
      %v1514 = vsel %vm285, %v1477, 0
      %v1517 = vsel %vm285, %v1478, 0
      %v1520 = vsel %vm285, %v1479, 0
      %v1523 = vsel %vm285, %v1480, 0
      %v1526 = vsel %vm285, %v1481, 0
      %v1529 = vsel %vm285, %v1482, 0
      %v1532 = vsel %vm285, %v1483, 0
      %v1535 = vsel %vm285, %v1484, 0
      %v1538 = vsel %vm285, %v1485, 0
      %v1541 = vsel %vm285, %v1486, 0
      %v1544 = vsel %vm340, %v1488, 0
      %1546 = vmatprep.subr.mxu0 0.0
      %1547 = vmatpush1.msra.mxu0 0.0
      %1548 = vmatprep.subr.mxu0 0.0
      %1549 = vmatpush1.msra.mxu0 0.0
      %1550 = vmatprep.subr.mxu0 0.0
      %1551 = vmatpush1.msra.mxu0 0.0
      %1552 = vmatprep.subr.mxu0 0.0
      %1553 = vmatpush1.msra.mxu0 0.0
      %1554 = vmatprep.subr.mxu0 0.0
      %1555 = vmatpush1.msra.mxu0 0.0
      %1556 = vmatprep.subr.mxu0 0.0
      %1557 = vmatpush1.msra.mxu0 0.0
      %1558 = vmatprep.subr.mxu0 0.0
      %1559 = vmatpush1.msra.mxu0 0.0
      %1560 = vmatprep.subr.mxu0 0.0
      %1561 = vmatpush1.msra.mxu0 0.0
      %1562 = vmatprep.subr.mxu0 0.0
      %1563 = vmatpush1.msra.mxu0 0.0
      %1564 = vmatprep.subr.mxu0 0.0
      %1565 = vmatpush1.msra.mxu0 0.0
      %1566 = vmatprep.subr.mxu0 0.0
      %1567 = vmatpush1.msra.mxu0 0.0
      %1568 = vmatprep.subr.mxu0 0.0
      %1569 = vmatpush1.msra.mxu0 0.0
      %1570 = vmatprep.subr.mxu0 0.0
      %1571 = vmatpush1.msra.mxu0 0.0
      %1572 = vmatprep.subr.mxu0 0.0
      %1573 = vmatpush1.msra.mxu0 0.0
      %1574 = vmatprep.subr.mxu0 0.0
      %1575 = vmatpush1.msra.mxu0 0.0
      %1576 = vmatprep.subr.mxu0 0.0
      %1577 = vmatpush1.msra.mxu0 %v1544
      %1578 = vmatprep.subr.mxu0 0.0
      %1579 = vmatpush2.msra.mxu0 0.0
      %1580 = vmatprep.subr.mxu0 0.0
      %1581 = vmatpush2.msra.mxu0 0.0
      %1582 = vmatprep.subr.mxu0 0.0
      %1583 = vmatpush2.msra.mxu0 0.0
      %1584 = vmatprep.subr.mxu0 0.0
      %1585 = vmatpush2.msra.mxu0 0.0
      %1586 = vmatprep.subr.mxu0 0.0
      %1587 = vmatpush2.msra.mxu0 0.0
      %1588 = vmatprep.subr.mxu0 0.0
      %1589 = vmatpush2.msra.mxu0 0.0
      %1590 = vmatprep.subr.mxu0 0.0
      %1591 = vmatpush2.msra.mxu0 0.0
      %1592 = vmatprep.subr.mxu0 0.0
      %1593 = vmatpush2.msra.mxu0 0.0
      %1594 = vmatprep.subr.mxu0 0.0
      %1595 = vmatpush2.msra.mxu0 0.0
      %1596 = vmatprep.subr.mxu0 0.0
      %1597 = vmatpush2.msra.mxu0 0.0
      %1598 = vmatprep.subr.mxu0 0.0
      %1599 = vmatpush2.msra.mxu0 0.0
      %1600 = vmatprep.subr.mxu0 0.0
      %1601 = vmatpush2.msra.mxu0 0.0
      %1602 = vmatprep.subr.mxu0 0.0
      %1603 = vmatpush2.msra.mxu0 0.0
      %1604 = vmatprep.subr.mxu0 0.0
      %1605 = vmatpush2.msra.mxu0 0.0
      %1606 = vmatprep.subr.mxu0 0.0
      %1607 = vmatpush2.msra.mxu0 0.0
      %1608 = vmatprep.subr.mxu0 0.0
      %1609 = vmatpush2.msra.mxu0 0.0
      %1610 = vmatprep.mubr.f32.mxu0 0.0
      %1611 = vmatmul.mubr.f32.gmra.mxu0 %v1490
      %v1612 = vpop.f32.mrf.mxu0
      %v1613 = vadd.f32 0.0, %v1612
      %v1614 = vpop.f32.mrf.mxu0
      %1615 = vmatprep.mubr.f32.mxu0 0.0
      %1616 = vmatmul.mubr.f32.gmra.mxu0 %v1493
      %v1617 = vpop.f32.mrf.mxu0
      %v1618 = vadd.f32 0.0, %v1617
      %v1619 = vpop.f32.mrf.mxu0
      %1620 = vmatprep.mubr.f32.mxu0 0.0
      %1621 = vmatmul.mubr.f32.gmra.mxu0 %v1496
      %v1622 = vpop.f32.mrf.mxu0
      %v1623 = vadd.f32 0.0, %v1622
      %v1624 = vpop.f32.mrf.mxu0
      %1625 = vmatprep.mubr.f32.mxu0 0.0
      %1626 = vmatmul.mubr.f32.gmra.mxu0 %v1499
      %v1627 = vpop.f32.mrf.mxu0
      %v1628 = vadd.f32 0.0, %v1627
      %v1629 = vpop.f32.mrf.mxu0
      %1630 = vmatprep.mubr.f32.mxu0 0.0
      %1631 = vmatmul.mubr.f32.gmra.mxu0 %v1502
      %v1632 = vpop.f32.mrf.mxu0
      %v1633 = vadd.f32 0.0, %v1632
      %v1634 = vpop.f32.mrf.mxu0
      %1635 = vmatprep.mubr.f32.mxu0 0.0
      %1636 = vmatmul.mubr.f32.gmra.mxu0 %v1505
      %v1637 = vpop.f32.mrf.mxu0
      %v1638 = vadd.f32 0.0, %v1637
      %v1639 = vpop.f32.mrf.mxu0
      %1640 = vmatprep.mubr.f32.mxu0 0.0
      %1641 = vmatmul.mubr.f32.gmra.mxu0 %v1508
      %v1642 = vpop.f32.mrf.mxu0
      %v1643 = vadd.f32 0.0, %v1642
      %v1644 = vpop.f32.mrf.mxu0
      %1645 = vmatprep.mubr.f32.mxu0 0.0
      %1646 = vmatmul.mubr.f32.gmra.mxu0 %v1511
      %v1647 = vpop.f32.mrf.mxu0
      %v1648 = vadd.f32 0.0, %v1647
      %v1649 = vpop.f32.mrf.mxu0
      %1650 = vmatprep.mubr.f32.mxu0 0.0
      %1651 = vmatmul.mubr.f32.gmra.mxu0 %v1514
      %v1652 = vpop.f32.mrf.mxu0
      %v1653 = vadd.f32 0.0, %v1652
      %v1654 = vpop.f32.mrf.mxu0
      %1655 = vmatprep.mubr.f32.mxu0 0.0
      %1656 = vmatmul.mubr.f32.gmra.mxu0 %v1517
      %v1657 = vpop.f32.mrf.mxu0
      %v1658 = vadd.f32 0.0, %v1657
      %v1659 = vpop.f32.mrf.mxu0
      %1660 = vmatprep.mubr.f32.mxu0 0.0
      %1661 = vmatmul.mubr.f32.gmra.mxu0 %v1520
      %v1662 = vpop.f32.mrf.mxu0
      %v1663 = vadd.f32 0.0, %v1662
      %v1664 = vpop.f32.mrf.mxu0
      %1665 = vmatprep.mubr.f32.mxu0 0.0
      %1666 = vmatmul.mubr.f32.gmra.mxu0 %v1523
      %v1667 = vpop.f32.mrf.mxu0
      %v1668 = vadd.f32 0.0, %v1667
      %v1669 = vpop.f32.mrf.mxu0
      %1670 = vmatprep.mubr.f32.mxu0 0.0
      %1671 = vmatmul.mubr.f32.gmra.mxu0 %v1526
      %v1672 = vpop.f32.mrf.mxu0
      %v1673 = vadd.f32 0.0, %v1672
      %v1674 = vpop.f32.mrf.mxu0
      %1675 = vmatprep.mubr.f32.mxu0 0.0
      %1676 = vmatmul.mubr.f32.gmra.mxu0 %v1529
      %v1677 = vpop.f32.mrf.mxu0
      %v1678 = vadd.f32 0.0, %v1677
      %v1679 = vpop.f32.mrf.mxu0
      %1680 = vmatprep.mubr.f32.mxu0 0.0
      %1681 = vmatmul.mubr.f32.gmra.mxu0 %v1532
      %v1682 = vpop.f32.mrf.mxu0
      %v1683 = vadd.f32 0.0, %v1682
      %v1684 = vpop.f32.mrf.mxu0
      %1685 = vmatprep.mubr.f32.mxu0 0.0
      %1686 = vmatmul.mubr.f32.gmra.mxu0 %v1535
      %v1687 = vpop.f32.mrf.mxu0
      %v1688 = vadd.f32 0.0, %v1687
      %v1689 = vpop.f32.mrf.mxu0
      %1690 = vmatprep.mubr.f32.mxu0 0.0
      %1691 = vmatmul.mubr.f32.gmra.mxu0 %v1538
      %v1692 = vpop.f32.mrf.mxu0
      %v1693 = vadd.f32 0.0, %v1692
      %v1694 = vpop.f32.mrf.mxu0
      %1695 = vmatprep.mubr.f32.mxu0 0.0
      %1696 = vmatmul.mubr.f32.gmra.mxu0 %v1541
      %v1697 = vpop.f32.mrf.mxu0
      %v1698 = vadd.f32 0.0, %v1697
      %v1699 = vpop.f32.mrf.mxu0
      %1700 = vdwg.mxu0
      %v1701 = vadd.f32 %v1449, %v1613
      %v1702 = vadd.f32 %v1450, %v1618
      %v1703 = vadd.f32 %v1451, %v1623
      %v1704 = vadd.f32 %v1452, %v1628
      %v1705 = vadd.f32 %v1453, %v1633
      %v1706 = vadd.f32 %v1454, %v1638
      %v1707 = vadd.f32 %v1455, %v1643
      %v1708 = vadd.f32 %v1456, %v1648
      %v1709 = vadd.f32 %v1457, %v1653
      %v1710 = vadd.f32 %v1458, %v1658
      %v1711 = vadd.f32 %v1459, %v1663
      %v1712 = vadd.f32 %v1460, %v1668
      %v1713 = vadd.f32 %v1461, %v1673
      %v1714 = vadd.f32 %v1462, %v1678
      %v1715 = vadd.f32 %v1463, %v1683
      %v1716 = vadd.f32 %v1464, %v1688
      %v1717 = vadd.f32 %v1465, %v1693
      %v1718 = vadd.f32 %v1466, %v1698
      %s1719 = sadd.s32 %s242, 36
      %s1720 = scalar_lea.vmem %s220, %s1719
      %v1721 = vld [vmem:[%s1720] sm:$0xff]
      %v1722 = vld [vmem:[%s1720 + $0x8] sm:$0xff]
      %v1723 = vld [vmem:[%s1720 + $0x10] sm:$0xff]
      %v1724 = vld [vmem:[%s1720 + $0x18] sm:$0xff]
      %v1725 = vld [vmem:[%s1720 + $0x20] sm:$0xff]
      %v1726 = vld [vmem:[%s1720 + $0x28] sm:$0xff]
      %v1727 = vld [vmem:[%s1720 + $0x30] sm:$0xff]
      %v1728 = vld [vmem:[%s1720 + $0x38] sm:$0xff]
      %v1729 = vld [vmem:[%s1720 + $0x40] sm:$0xff]
      %v1730 = vld [vmem:[%s1720 + $0x48] sm:$0xff]
      %v1731 = vld [vmem:[%s1720 + $0x50] sm:$0xff]
      %v1732 = vld [vmem:[%s1720 + $0x58] sm:$0xff]
      %v1733 = vld [vmem:[%s1720 + $0x60] sm:$0xff]
      %v1734 = vld [vmem:[%s1720 + $0x68] sm:$0xff]
      %v1735 = vld [vmem:[%s1720 + $0x70] sm:$0xff]
      %v1736 = vld [vmem:[%s1720 + $0x78] sm:$0xff]
      %v1737 = vld [vmem:[%s1720 + $0x80] sm:$0xff]
      %v1738 = vld [vmem:[%s1720 + $0x88] sm:$0xff]
      %s1739 = scalar_lea.vmem %s224, 24
      %v1740 = vld [vmem:[%s1739] sm:$0xf]
      %v1742 = vsel %vm285, %v1721, 0
      %v1745 = vsel %vm285, %v1722, 0
      %v1748 = vsel %vm285, %v1723, 0
      %v1751 = vsel %vm285, %v1724, 0
      %v1754 = vsel %vm285, %v1725, 0
      %v1757 = vsel %vm285, %v1726, 0
      %v1760 = vsel %vm285, %v1727, 0
      %v1763 = vsel %vm285, %v1728, 0
      %v1766 = vsel %vm285, %v1729, 0
      %v1769 = vsel %vm285, %v1730, 0
      %v1772 = vsel %vm285, %v1731, 0
      %v1775 = vsel %vm285, %v1732, 0
      %v1778 = vsel %vm285, %v1733, 0
      %v1781 = vsel %vm285, %v1734, 0
      %v1784 = vsel %vm285, %v1735, 0
      %v1787 = vsel %vm285, %v1736, 0
      %v1790 = vsel %vm285, %v1737, 0
      %v1793 = vsel %vm285, %v1738, 0
      %v1796 = vsel %vm340, %v1740, 0
      %1798 = vmatprep.subr.mxu0 0.0
      %1799 = vmatpush1.msra.mxu0 0.0
      %1800 = vmatprep.subr.mxu0 0.0
      %1801 = vmatpush1.msra.mxu0 0.0
      %1802 = vmatprep.subr.mxu0 0.0
      %1803 = vmatpush1.msra.mxu0 0.0
      %1804 = vmatprep.subr.mxu0 0.0
      %1805 = vmatpush1.msra.mxu0 0.0
      %1806 = vmatprep.subr.mxu0 0.0
      %1807 = vmatpush1.msra.mxu0 0.0
      %1808 = vmatprep.subr.mxu0 0.0
      %1809 = vmatpush1.msra.mxu0 0.0
      %1810 = vmatprep.subr.mxu0 0.0
      %1811 = vmatpush1.msra.mxu0 0.0
      %1812 = vmatprep.subr.mxu0 0.0
      %1813 = vmatpush1.msra.mxu0 0.0
      %1814 = vmatprep.subr.mxu0 0.0
      %1815 = vmatpush1.msra.mxu0 0.0
      %1816 = vmatprep.subr.mxu0 0.0
      %1817 = vmatpush1.msra.mxu0 0.0
      %1818 = vmatprep.subr.mxu0 0.0
      %1819 = vmatpush1.msra.mxu0 0.0
      %1820 = vmatprep.subr.mxu0 0.0
      %1821 = vmatpush1.msra.mxu0 0.0
      %1822 = vmatprep.subr.mxu0 0.0
      %1823 = vmatpush1.msra.mxu0 0.0
      %1824 = vmatprep.subr.mxu0 0.0
      %1825 = vmatpush1.msra.mxu0 0.0
      %1826 = vmatprep.subr.mxu0 0.0
      %1827 = vmatpush1.msra.mxu0 0.0
      %1828 = vmatprep.subr.mxu0 0.0
      %1829 = vmatpush1.msra.mxu0 %v1796
      %1830 = vmatprep.subr.mxu0 0.0
      %1831 = vmatpush2.msra.mxu0 0.0
      %1832 = vmatprep.subr.mxu0 0.0
      %1833 = vmatpush2.msra.mxu0 0.0
      %1834 = vmatprep.subr.mxu0 0.0
      %1835 = vmatpush2.msra.mxu0 0.0
      %1836 = vmatprep.subr.mxu0 0.0
      %1837 = vmatpush2.msra.mxu0 0.0
      %1838 = vmatprep.subr.mxu0 0.0
      %1839 = vmatpush2.msra.mxu0 0.0
      %1840 = vmatprep.subr.mxu0 0.0
      %1841 = vmatpush2.msra.mxu0 0.0
      %1842 = vmatprep.subr.mxu0 0.0
      %1843 = vmatpush2.msra.mxu0 0.0
      %1844 = vmatprep.subr.mxu0 0.0
      %1845 = vmatpush2.msra.mxu0 0.0
      %1846 = vmatprep.subr.mxu0 0.0
      %1847 = vmatpush2.msra.mxu0 0.0
      %1848 = vmatprep.subr.mxu0 0.0
      %1849 = vmatpush2.msra.mxu0 0.0
      %1850 = vmatprep.subr.mxu0 0.0
      %1851 = vmatpush2.msra.mxu0 0.0
      %1852 = vmatprep.subr.mxu0 0.0
      %1853 = vmatpush2.msra.mxu0 0.0
      %1854 = vmatprep.subr.mxu0 0.0
      %1855 = vmatpush2.msra.mxu0 0.0
      %1856 = vmatprep.subr.mxu0 0.0
      %1857 = vmatpush2.msra.mxu0 0.0
      %1858 = vmatprep.subr.mxu0 0.0
      %1859 = vmatpush2.msra.mxu0 0.0
      %1860 = vmatprep.subr.mxu0 0.0
      %1861 = vmatpush2.msra.mxu0 0.0
      %1862 = vmatprep.mubr.f32.mxu0 0.0
      %1863 = vmatmul.mubr.f32.gmra.mxu0 %v1742
      %v1864 = vpop.f32.mrf.mxu0
      %v1865 = vadd.f32 0.0, %v1864
      %v1866 = vpop.f32.mrf.mxu0
      %1867 = vmatprep.mubr.f32.mxu0 0.0
      %1868 = vmatmul.mubr.f32.gmra.mxu0 %v1745
      %v1869 = vpop.f32.mrf.mxu0
      %v1870 = vadd.f32 0.0, %v1869
      %v1871 = vpop.f32.mrf.mxu0
      %1872 = vmatprep.mubr.f32.mxu0 0.0
      %1873 = vmatmul.mubr.f32.gmra.mxu0 %v1748
      %v1874 = vpop.f32.mrf.mxu0
      %v1875 = vadd.f32 0.0, %v1874
      %v1876 = vpop.f32.mrf.mxu0
      %1877 = vmatprep.mubr.f32.mxu0 0.0
      %1878 = vmatmul.mubr.f32.gmra.mxu0 %v1751
      %v1879 = vpop.f32.mrf.mxu0
      %v1880 = vadd.f32 0.0, %v1879
      %v1881 = vpop.f32.mrf.mxu0
      %1882 = vmatprep.mubr.f32.mxu0 0.0
      %1883 = vmatmul.mubr.f32.gmra.mxu0 %v1754
      %v1884 = vpop.f32.mrf.mxu0
      %v1885 = vadd.f32 0.0, %v1884
      %v1886 = vpop.f32.mrf.mxu0
      %1887 = vmatprep.mubr.f32.mxu0 0.0
      %1888 = vmatmul.mubr.f32.gmra.mxu0 %v1757
      %v1889 = vpop.f32.mrf.mxu0
      %v1890 = vadd.f32 0.0, %v1889
      %v1891 = vpop.f32.mrf.mxu0
      %1892 = vmatprep.mubr.f32.mxu0 0.0
      %1893 = vmatmul.mubr.f32.gmra.mxu0 %v1760
      %v1894 = vpop.f32.mrf.mxu0
      %v1895 = vadd.f32 0.0, %v1894
      %v1896 = vpop.f32.mrf.mxu0
      %1897 = vmatprep.mubr.f32.mxu0 0.0
      %1898 = vmatmul.mubr.f32.gmra.mxu0 %v1763
      %v1899 = vpop.f32.mrf.mxu0
      %v1900 = vadd.f32 0.0, %v1899
      %v1901 = vpop.f32.mrf.mxu0
      %1902 = vmatprep.mubr.f32.mxu0 0.0
      %1903 = vmatmul.mubr.f32.gmra.mxu0 %v1766
      %v1904 = vpop.f32.mrf.mxu0
      %v1905 = vadd.f32 0.0, %v1904
      %v1906 = vpop.f32.mrf.mxu0
      %1907 = vmatprep.mubr.f32.mxu0 0.0
      %1908 = vmatmul.mubr.f32.gmra.mxu0 %v1769
      %v1909 = vpop.f32.mrf.mxu0
      %v1910 = vadd.f32 0.0, %v1909
      %v1911 = vpop.f32.mrf.mxu0
      %1912 = vmatprep.mubr.f32.mxu0 0.0
      %1913 = vmatmul.mubr.f32.gmra.mxu0 %v1772
      %v1914 = vpop.f32.mrf.mxu0
      %v1915 = vadd.f32 0.0, %v1914
      %v1916 = vpop.f32.mrf.mxu0
      %1917 = vmatprep.mubr.f32.mxu0 0.0
      %1918 = vmatmul.mubr.f32.gmra.mxu0 %v1775
      %v1919 = vpop.f32.mrf.mxu0
      %v1920 = vadd.f32 0.0, %v1919
      %v1921 = vpop.f32.mrf.mxu0
      %1922 = vmatprep.mubr.f32.mxu0 0.0
      %1923 = vmatmul.mubr.f32.gmra.mxu0 %v1778
      %v1924 = vpop.f32.mrf.mxu0
      %v1925 = vadd.f32 0.0, %v1924
      %v1926 = vpop.f32.mrf.mxu0
      %1927 = vmatprep.mubr.f32.mxu0 0.0
      %1928 = vmatmul.mubr.f32.gmra.mxu0 %v1781
      %v1929 = vpop.f32.mrf.mxu0
      %v1930 = vadd.f32 0.0, %v1929
      %v1931 = vpop.f32.mrf.mxu0
      %1932 = vmatprep.mubr.f32.mxu0 0.0
      %1933 = vmatmul.mubr.f32.gmra.mxu0 %v1784
      %v1934 = vpop.f32.mrf.mxu0
      %v1935 = vadd.f32 0.0, %v1934
      %v1936 = vpop.f32.mrf.mxu0
      %1937 = vmatprep.mubr.f32.mxu0 0.0
      %1938 = vmatmul.mubr.f32.gmra.mxu0 %v1787
      %v1939 = vpop.f32.mrf.mxu0
      %v1940 = vadd.f32 0.0, %v1939
      %v1941 = vpop.f32.mrf.mxu0
      %1942 = vmatprep.mubr.f32.mxu0 0.0
      %1943 = vmatmul.mubr.f32.gmra.mxu0 %v1790
      %v1944 = vpop.f32.mrf.mxu0
      %v1945 = vadd.f32 0.0, %v1944
      %v1946 = vpop.f32.mrf.mxu0
      %1947 = vmatprep.mubr.f32.mxu0 0.0
      %1948 = vmatmul.mubr.f32.gmra.mxu0 %v1793
      %v1949 = vpop.f32.mrf.mxu0
      %v1950 = vadd.f32 0.0, %v1949
      %v1951 = vpop.f32.mrf.mxu0
      %1952 = vdwg.mxu0
      %v1953 = vadd.f32 %v1701, %v1865
      %v1954 = vadd.f32 %v1702, %v1870
      %v1955 = vadd.f32 %v1703, %v1875
      %v1956 = vadd.f32 %v1704, %v1880
      %v1957 = vadd.f32 %v1705, %v1885
      %v1958 = vadd.f32 %v1706, %v1890
      %v1959 = vadd.f32 %v1707, %v1895
      %v1960 = vadd.f32 %v1708, %v1900
      %v1961 = vadd.f32 %v1709, %v1905
      %v1962 = vadd.f32 %v1710, %v1910
      %v1963 = vadd.f32 %v1711, %v1915
      %v1964 = vadd.f32 %v1712, %v1920
      %v1965 = vadd.f32 %v1713, %v1925
      %v1966 = vadd.f32 %v1714, %v1930
      %v1967 = vadd.f32 %v1715, %v1935
      %v1968 = vadd.f32 %v1716, %v1940
      %v1969 = vadd.f32 %v1717, %v1945
      %v1970 = vadd.f32 %v1718, %v1950
      %s1971 = sadd.s32 %s242, 37
      %s1972 = scalar_lea.vmem %s220, %s1971
      %v1973 = vld [vmem:[%s1972] sm:$0xff]
      %v1974 = vld [vmem:[%s1972 + $0x8] sm:$0xff]
      %v1975 = vld [vmem:[%s1972 + $0x10] sm:$0xff]
      %v1976 = vld [vmem:[%s1972 + $0x18] sm:$0xff]
      %v1977 = vld [vmem:[%s1972 + $0x20] sm:$0xff]
      %v1978 = vld [vmem:[%s1972 + $0x28] sm:$0xff]
      %v1979 = vld [vmem:[%s1972 + $0x30] sm:$0xff]
      %v1980 = vld [vmem:[%s1972 + $0x38] sm:$0xff]
      %v1981 = vld [vmem:[%s1972 + $0x40] sm:$0xff]
      %v1982 = vld [vmem:[%s1972 + $0x48] sm:$0xff]
      %v1983 = vld [vmem:[%s1972 + $0x50] sm:$0xff]
      %v1984 = vld [vmem:[%s1972 + $0x58] sm:$0xff]
      %v1985 = vld [vmem:[%s1972 + $0x60] sm:$0xff]
      %v1986 = vld [vmem:[%s1972 + $0x68] sm:$0xff]
      %v1987 = vld [vmem:[%s1972 + $0x70] sm:$0xff]
      %v1988 = vld [vmem:[%s1972 + $0x78] sm:$0xff]
      %v1989 = vld [vmem:[%s1972 + $0x80] sm:$0xff]
      %v1990 = vld [vmem:[%s1972 + $0x88] sm:$0xff]
      %s1991 = scalar_lea.vmem %s224, 28
      %v1992 = vld [vmem:[%s1991] sm:$0xf]
      %v1994 = vsel %vm285, %v1973, 0
      %v1997 = vsel %vm285, %v1974, 0
      %v2000 = vsel %vm285, %v1975, 0
      %v2003 = vsel %vm285, %v1976, 0
      %v2006 = vsel %vm285, %v1977, 0
      %v2009 = vsel %vm285, %v1978, 0
      %v2012 = vsel %vm285, %v1979, 0
      %v2015 = vsel %vm285, %v1980, 0
      %v2018 = vsel %vm285, %v1981, 0
      %v2021 = vsel %vm285, %v1982, 0
      %v2024 = vsel %vm285, %v1983, 0
      %v2027 = vsel %vm285, %v1984, 0
      %v2030 = vsel %vm285, %v1985, 0
      %v2033 = vsel %vm285, %v1986, 0
      %v2036 = vsel %vm285, %v1987, 0
      %v2039 = vsel %vm285, %v1988, 0
      %v2042 = vsel %vm285, %v1989, 0
      %v2045 = vsel %vm285, %v1990, 0
      %v2048 = vsel %vm340, %v1992, 0
      %2050 = vmatprep.subr.mxu0 0.0
      %2051 = vmatpush1.msra.mxu0 0.0
      %2052 = vmatprep.subr.mxu0 0.0
      %2053 = vmatpush1.msra.mxu0 0.0
      %2054 = vmatprep.subr.mxu0 0.0
      %2055 = vmatpush1.msra.mxu0 0.0
      %2056 = vmatprep.subr.mxu0 0.0
      %2057 = vmatpush1.msra.mxu0 0.0
      %2058 = vmatprep.subr.mxu0 0.0
      %2059 = vmatpush1.msra.mxu0 0.0
      %2060 = vmatprep.subr.mxu0 0.0
      %2061 = vmatpush1.msra.mxu0 0.0
      %2062 = vmatprep.subr.mxu0 0.0
      %2063 = vmatpush1.msra.mxu0 0.0
      %2064 = vmatprep.subr.mxu0 0.0
      %2065 = vmatpush1.msra.mxu0 0.0
      %2066 = vmatprep.subr.mxu0 0.0
      %2067 = vmatpush1.msra.mxu0 0.0
      %2068 = vmatprep.subr.mxu0 0.0
      %2069 = vmatpush1.msra.mxu0 0.0
      %2070 = vmatprep.subr.mxu0 0.0
      %2071 = vmatpush1.msra.mxu0 0.0
      %2072 = vmatprep.subr.mxu0 0.0
      %2073 = vmatpush1.msra.mxu0 0.0
      %2074 = vmatprep.subr.mxu0 0.0
      %2075 = vmatpush1.msra.mxu0 0.0
      %2076 = vmatprep.subr.mxu0 0.0
      %2077 = vmatpush1.msra.mxu0 0.0
      %2078 = vmatprep.subr.mxu0 0.0
      %2079 = vmatpush1.msra.mxu0 0.0
      %2080 = vmatprep.subr.mxu0 0.0
      %2081 = vmatpush1.msra.mxu0 %v2048
      %2082 = vmatprep.subr.mxu0 0.0
      %2083 = vmatpush2.msra.mxu0 0.0
      %2084 = vmatprep.subr.mxu0 0.0
      %2085 = vmatpush2.msra.mxu0 0.0
      %2086 = vmatprep.subr.mxu0 0.0
      %2087 = vmatpush2.msra.mxu0 0.0
      %2088 = vmatprep.subr.mxu0 0.0
      %2089 = vmatpush2.msra.mxu0 0.0
      %2090 = vmatprep.subr.mxu0 0.0
      %2091 = vmatpush2.msra.mxu0 0.0
      %2092 = vmatprep.subr.mxu0 0.0
      %2093 = vmatpush2.msra.mxu0 0.0
      %2094 = vmatprep.subr.mxu0 0.0
      %2095 = vmatpush2.msra.mxu0 0.0
      %2096 = vmatprep.subr.mxu0 0.0
      %2097 = vmatpush2.msra.mxu0 0.0
      %2098 = vmatprep.subr.mxu0 0.0
      %2099 = vmatpush2.msra.mxu0 0.0
      %2100 = vmatprep.subr.mxu0 0.0
      %2101 = vmatpush2.msra.mxu0 0.0
      %2102 = vmatprep.subr.mxu0 0.0
      %2103 = vmatpush2.msra.mxu0 0.0
      %2104 = vmatprep.subr.mxu0 0.0
      %2105 = vmatpush2.msra.mxu0 0.0
      %2106 = vmatprep.subr.mxu0 0.0
      %2107 = vmatpush2.msra.mxu0 0.0
      %2108 = vmatprep.subr.mxu0 0.0
      %2109 = vmatpush2.msra.mxu0 0.0
      %2110 = vmatprep.subr.mxu0 0.0
      %2111 = vmatpush2.msra.mxu0 0.0
      %2112 = vmatprep.subr.mxu0 0.0
      %2113 = vmatpush2.msra.mxu0 0.0
      %2114 = vmatprep.mubr.f32.mxu0 0.0
      %2115 = vmatmul.mubr.f32.gmra.mxu0 %v1994
      %v2116 = vpop.f32.mrf.mxu0
      %v2117 = vadd.f32 0.0, %v2116
      %v2118 = vpop.f32.mrf.mxu0
      %2119 = vmatprep.mubr.f32.mxu0 0.0
      %2120 = vmatmul.mubr.f32.gmra.mxu0 %v1997
      %v2121 = vpop.f32.mrf.mxu0
      %v2122 = vadd.f32 0.0, %v2121
      %v2123 = vpop.f32.mrf.mxu0
      %2124 = vmatprep.mubr.f32.mxu0 0.0
      %2125 = vmatmul.mubr.f32.gmra.mxu0 %v2000
      %v2126 = vpop.f32.mrf.mxu0
      %v2127 = vadd.f32 0.0, %v2126
      %v2128 = vpop.f32.mrf.mxu0
      %2129 = vmatprep.mubr.f32.mxu0 0.0
      %2130 = vmatmul.mubr.f32.gmra.mxu0 %v2003
      %v2131 = vpop.f32.mrf.mxu0
      %v2132 = vadd.f32 0.0, %v2131
      %v2133 = vpop.f32.mrf.mxu0
      %2134 = vmatprep.mubr.f32.mxu0 0.0
      %2135 = vmatmul.mubr.f32.gmra.mxu0 %v2006
      %v2136 = vpop.f32.mrf.mxu0
      %v2137 = vadd.f32 0.0, %v2136
      %v2138 = vpop.f32.mrf.mxu0
      %2139 = vmatprep.mubr.f32.mxu0 0.0
      %2140 = vmatmul.mubr.f32.gmra.mxu0 %v2009
      %v2141 = vpop.f32.mrf.mxu0
      %v2142 = vadd.f32 0.0, %v2141
      %v2143 = vpop.f32.mrf.mxu0
      %2144 = vmatprep.mubr.f32.mxu0 0.0
      %2145 = vmatmul.mubr.f32.gmra.mxu0 %v2012
      %v2146 = vpop.f32.mrf.mxu0
      %v2147 = vadd.f32 0.0, %v2146
      %v2148 = vpop.f32.mrf.mxu0
      %2149 = vmatprep.mubr.f32.mxu0 0.0
      %2150 = vmatmul.mubr.f32.gmra.mxu0 %v2015
      %v2151 = vpop.f32.mrf.mxu0
      %v2152 = vadd.f32 0.0, %v2151
      %v2153 = vpop.f32.mrf.mxu0
      %2154 = vmatprep.mubr.f32.mxu0 0.0
      %2155 = vmatmul.mubr.f32.gmra.mxu0 %v2018
      %v2156 = vpop.f32.mrf.mxu0
      %v2157 = vadd.f32 0.0, %v2156
      %v2158 = vpop.f32.mrf.mxu0
      %2159 = vmatprep.mubr.f32.mxu0 0.0
      %2160 = vmatmul.mubr.f32.gmra.mxu0 %v2021
      %v2161 = vpop.f32.mrf.mxu0
      %v2162 = vadd.f32 0.0, %v2161
      %v2163 = vpop.f32.mrf.mxu0
      %2164 = vmatprep.mubr.f32.mxu0 0.0
      %2165 = vmatmul.mubr.f32.gmra.mxu0 %v2024
      %v2166 = vpop.f32.mrf.mxu0
      %v2167 = vadd.f32 0.0, %v2166
      %v2168 = vpop.f32.mrf.mxu0
      %2169 = vmatprep.mubr.f32.mxu0 0.0
      %2170 = vmatmul.mubr.f32.gmra.mxu0 %v2027
      %v2171 = vpop.f32.mrf.mxu0
      %v2172 = vadd.f32 0.0, %v2171
      %v2173 = vpop.f32.mrf.mxu0
      %2174 = vmatprep.mubr.f32.mxu0 0.0
      %2175 = vmatmul.mubr.f32.gmra.mxu0 %v2030
      %v2176 = vpop.f32.mrf.mxu0
      %v2177 = vadd.f32 0.0, %v2176
      %v2178 = vpop.f32.mrf.mxu0
      %2179 = vmatprep.mubr.f32.mxu0 0.0
      %2180 = vmatmul.mubr.f32.gmra.mxu0 %v2033
      %v2181 = vpop.f32.mrf.mxu0
      %v2182 = vadd.f32 0.0, %v2181
      %v2183 = vpop.f32.mrf.mxu0
      %2184 = vmatprep.mubr.f32.mxu0 0.0
      %2185 = vmatmul.mubr.f32.gmra.mxu0 %v2036
      %v2186 = vpop.f32.mrf.mxu0
      %v2187 = vadd.f32 0.0, %v2186
      %v2188 = vpop.f32.mrf.mxu0
      %2189 = vmatprep.mubr.f32.mxu0 0.0
      %2190 = vmatmul.mubr.f32.gmra.mxu0 %v2039
      %v2191 = vpop.f32.mrf.mxu0
      %v2192 = vadd.f32 0.0, %v2191
      %v2193 = vpop.f32.mrf.mxu0
      %2194 = vmatprep.mubr.f32.mxu0 0.0
      %2195 = vmatmul.mubr.f32.gmra.mxu0 %v2042
      %v2196 = vpop.f32.mrf.mxu0
      %v2197 = vadd.f32 0.0, %v2196
      %v2198 = vpop.f32.mrf.mxu0
      %2199 = vmatprep.mubr.f32.mxu0 0.0
      %2200 = vmatmul.mubr.f32.gmra.mxu0 %v2045
      %v2201 = vpop.f32.mrf.mxu0
      %v2202 = vadd.f32 0.0, %v2201
      %v2203 = vpop.f32.mrf.mxu0
      %2204 = vdwg.mxu0
      %v2205 = vadd.f32 %v1953, %v2117
      %v2206 = vadd.f32 %v1954, %v2122
      %v2207 = vadd.f32 %v1955, %v2127
      %v2208 = vadd.f32 %v1956, %v2132
      %v2209 = vadd.f32 %v1957, %v2137
      %v2210 = vadd.f32 %v1958, %v2142
      %v2211 = vadd.f32 %v1959, %v2147
      %v2212 = vadd.f32 %v1960, %v2152
      %v2213 = vadd.f32 %v1961, %v2157
      %v2214 = vadd.f32 %v1962, %v2162
      %v2215 = vadd.f32 %v1963, %v2167
      %v2216 = vadd.f32 %v1964, %v2172
      %v2217 = vadd.f32 %v1965, %v2177
      %v2218 = vadd.f32 %v1966, %v2182
      %v2219 = vadd.f32 %v1967, %v2187
      %v2220 = vadd.f32 %v1968, %v2192
      %v2221 = vadd.f32 %v1969, %v2197
      %v2222 = vadd.f32 %v1970, %v2202
      %s2223 = sadd.s32 %s242, 38
      %s2224 = scalar_lea.vmem %s220, %s2223
      %v2225 = vld [vmem:[%s2224] sm:$0xff]
      %v2226 = vld [vmem:[%s2224 + $0x8] sm:$0xff]
      %v2227 = vld [vmem:[%s2224 + $0x10] sm:$0xff]
      %v2228 = vld [vmem:[%s2224 + $0x18] sm:$0xff]
      %v2229 = vld [vmem:[%s2224 + $0x20] sm:$0xff]
      %v2230 = vld [vmem:[%s2224 + $0x28] sm:$0xff]
      %v2231 = vld [vmem:[%s2224 + $0x30] sm:$0xff]
      %v2232 = vld [vmem:[%s2224 + $0x38] sm:$0xff]
      %v2233 = vld [vmem:[%s2224 + $0x40] sm:$0xff]
      %v2234 = vld [vmem:[%s2224 + $0x48] sm:$0xff]
      %v2235 = vld [vmem:[%s2224 + $0x50] sm:$0xff]
      %v2236 = vld [vmem:[%s2224 + $0x58] sm:$0xff]
      %v2237 = vld [vmem:[%s2224 + $0x60] sm:$0xff]
      %v2238 = vld [vmem:[%s2224 + $0x68] sm:$0xff]
      %v2239 = vld [vmem:[%s2224 + $0x70] sm:$0xff]
      %v2240 = vld [vmem:[%s2224 + $0x78] sm:$0xff]
      %v2241 = vld [vmem:[%s2224 + $0x80] sm:$0xff]
      %v2242 = vld [vmem:[%s2224 + $0x88] sm:$0xff]
      %s2243 = scalar_lea.vmem %s224, 32
      %v2244 = vld [vmem:[%s2243] sm:$0xf]
      %v2246 = vsel %vm285, %v2225, 0
      %v2249 = vsel %vm285, %v2226, 0
      %v2252 = vsel %vm285, %v2227, 0
      %v2255 = vsel %vm285, %v2228, 0
      %v2258 = vsel %vm285, %v2229, 0
      %v2261 = vsel %vm285, %v2230, 0
      %v2264 = vsel %vm285, %v2231, 0
      %v2267 = vsel %vm285, %v2232, 0
      %v2270 = vsel %vm285, %v2233, 0
      %v2273 = vsel %vm285, %v2234, 0
      %v2276 = vsel %vm285, %v2235, 0
      %v2279 = vsel %vm285, %v2236, 0
      %v2282 = vsel %vm285, %v2237, 0
      %v2285 = vsel %vm285, %v2238, 0
      %v2288 = vsel %vm285, %v2239, 0
      %v2291 = vsel %vm285, %v2240, 0
      %v2294 = vsel %vm285, %v2241, 0
      %v2297 = vsel %vm285, %v2242, 0
      %v2300 = vsel %vm340, %v2244, 0
      %2302 = vmatprep.subr.mxu0 0.0
      %2303 = vmatpush1.msra.mxu0 0.0
      %2304 = vmatprep.subr.mxu0 0.0
      %2305 = vmatpush1.msra.mxu0 0.0
      %2306 = vmatprep.subr.mxu0 0.0
      %2307 = vmatpush1.msra.mxu0 0.0
      %2308 = vmatprep.subr.mxu0 0.0
      %2309 = vmatpush1.msra.mxu0 0.0
      %2310 = vmatprep.subr.mxu0 0.0
      %2311 = vmatpush1.msra.mxu0 0.0
      %2312 = vmatprep.subr.mxu0 0.0
      %2313 = vmatpush1.msra.mxu0 0.0
      %2314 = vmatprep.subr.mxu0 0.0
      %2315 = vmatpush1.msra.mxu0 0.0
      %2316 = vmatprep.subr.mxu0 0.0
      %2317 = vmatpush1.msra.mxu0 0.0
      %2318 = vmatprep.subr.mxu0 0.0
      %2319 = vmatpush1.msra.mxu0 0.0
      %2320 = vmatprep.subr.mxu0 0.0
      %2321 = vmatpush1.msra.mxu0 0.0
      %2322 = vmatprep.subr.mxu0 0.0
      %2323 = vmatpush1.msra.mxu0 0.0
      %2324 = vmatprep.subr.mxu0 0.0
      %2325 = vmatpush1.msra.mxu0 0.0
      %2326 = vmatprep.subr.mxu0 0.0
      %2327 = vmatpush1.msra.mxu0 0.0
      %2328 = vmatprep.subr.mxu0 0.0
      %2329 = vmatpush1.msra.mxu0 0.0
      %2330 = vmatprep.subr.mxu0 0.0
      %2331 = vmatpush1.msra.mxu0 0.0
      %2332 = vmatprep.subr.mxu0 0.0
      %2333 = vmatpush1.msra.mxu0 %v2300
      %2334 = vmatprep.subr.mxu0 0.0
      %2335 = vmatpush2.msra.mxu0 0.0
      %2336 = vmatprep.subr.mxu0 0.0
      %2337 = vmatpush2.msra.mxu0 0.0
      %2338 = vmatprep.subr.mxu0 0.0
      %2339 = vmatpush2.msra.mxu0 0.0
      %2340 = vmatprep.subr.mxu0 0.0
      %2341 = vmatpush2.msra.mxu0 0.0
      %2342 = vmatprep.subr.mxu0 0.0
      %2343 = vmatpush2.msra.mxu0 0.0
      %2344 = vmatprep.subr.mxu0 0.0
      %2345 = vmatpush2.msra.mxu0 0.0
      %2346 = vmatprep.subr.mxu0 0.0
      %2347 = vmatpush2.msra.mxu0 0.0
      %2348 = vmatprep.subr.mxu0 0.0
      %2349 = vmatpush2.msra.mxu0 0.0
      %2350 = vmatprep.subr.mxu0 0.0
      %2351 = vmatpush2.msra.mxu0 0.0
      %2352 = vmatprep.subr.mxu0 0.0
      %2353 = vmatpush2.msra.mxu0 0.0
      %2354 = vmatprep.subr.mxu0 0.0
      %2355 = vmatpush2.msra.mxu0 0.0
      %2356 = vmatprep.subr.mxu0 0.0
      %2357 = vmatpush2.msra.mxu0 0.0
      %2358 = vmatprep.subr.mxu0 0.0
      %2359 = vmatpush2.msra.mxu0 0.0
      %2360 = vmatprep.subr.mxu0 0.0
      %2361 = vmatpush2.msra.mxu0 0.0
      %2362 = vmatprep.subr.mxu0 0.0
      %2363 = vmatpush2.msra.mxu0 0.0
      %2364 = vmatprep.subr.mxu0 0.0
      %2365 = vmatpush2.msra.mxu0 0.0
      %2366 = vmatprep.mubr.f32.mxu0 0.0
      %2367 = vmatmul.mubr.f32.gmra.mxu0 %v2246
      %v2368 = vpop.f32.mrf.mxu0
      %v2369 = vadd.f32 0.0, %v2368
      %v2370 = vpop.f32.mrf.mxu0
      %2371 = vmatprep.mubr.f32.mxu0 0.0
      %2372 = vmatmul.mubr.f32.gmra.mxu0 %v2249
      %v2373 = vpop.f32.mrf.mxu0
      %v2374 = vadd.f32 0.0, %v2373
      %v2375 = vpop.f32.mrf.mxu0
      %2376 = vmatprep.mubr.f32.mxu0 0.0
      %2377 = vmatmul.mubr.f32.gmra.mxu0 %v2252
      %v2378 = vpop.f32.mrf.mxu0
      %v2379 = vadd.f32 0.0, %v2378
      %v2380 = vpop.f32.mrf.mxu0
      %2381 = vmatprep.mubr.f32.mxu0 0.0
      %2382 = vmatmul.mubr.f32.gmra.mxu0 %v2255
      %v2383 = vpop.f32.mrf.mxu0
      %v2384 = vadd.f32 0.0, %v2383
      %v2385 = vpop.f32.mrf.mxu0
      %2386 = vmatprep.mubr.f32.mxu0 0.0
      %2387 = vmatmul.mubr.f32.gmra.mxu0 %v2258
      %v2388 = vpop.f32.mrf.mxu0
      %v2389 = vadd.f32 0.0, %v2388
      %v2390 = vpop.f32.mrf.mxu0
      %2391 = vmatprep.mubr.f32.mxu0 0.0
      %2392 = vmatmul.mubr.f32.gmra.mxu0 %v2261
      %v2393 = vpop.f32.mrf.mxu0
      %v2394 = vadd.f32 0.0, %v2393
      %v2395 = vpop.f32.mrf.mxu0
      %2396 = vmatprep.mubr.f32.mxu0 0.0
      %2397 = vmatmul.mubr.f32.gmra.mxu0 %v2264
      %v2398 = vpop.f32.mrf.mxu0
      %v2399 = vadd.f32 0.0, %v2398
      %v2400 = vpop.f32.mrf.mxu0
      %2401 = vmatprep.mubr.f32.mxu0 0.0
      %2402 = vmatmul.mubr.f32.gmra.mxu0 %v2267
      %v2403 = vpop.f32.mrf.mxu0
      %v2404 = vadd.f32 0.0, %v2403
      %v2405 = vpop.f32.mrf.mxu0
      %2406 = vmatprep.mubr.f32.mxu0 0.0
      %2407 = vmatmul.mubr.f32.gmra.mxu0 %v2270
      %v2408 = vpop.f32.mrf.mxu0
      %v2409 = vadd.f32 0.0, %v2408
      %v2410 = vpop.f32.mrf.mxu0
      %2411 = vmatprep.mubr.f32.mxu0 0.0
      %2412 = vmatmul.mubr.f32.gmra.mxu0 %v2273
      %v2413 = vpop.f32.mrf.mxu0
      %v2414 = vadd.f32 0.0, %v2413
      %v2415 = vpop.f32.mrf.mxu0
      %2416 = vmatprep.mubr.f32.mxu0 0.0
      %2417 = vmatmul.mubr.f32.gmra.mxu0 %v2276
      %v2418 = vpop.f32.mrf.mxu0
      %v2419 = vadd.f32 0.0, %v2418
      %v2420 = vpop.f32.mrf.mxu0
      %2421 = vmatprep.mubr.f32.mxu0 0.0
      %2422 = vmatmul.mubr.f32.gmra.mxu0 %v2279
      %v2423 = vpop.f32.mrf.mxu0
      %v2424 = vadd.f32 0.0, %v2423
      %v2425 = vpop.f32.mrf.mxu0
      %2426 = vmatprep.mubr.f32.mxu0 0.0
      %2427 = vmatmul.mubr.f32.gmra.mxu0 %v2282
      %v2428 = vpop.f32.mrf.mxu0
      %v2429 = vadd.f32 0.0, %v2428
      %v2430 = vpop.f32.mrf.mxu0
      %2431 = vmatprep.mubr.f32.mxu0 0.0
      %2432 = vmatmul.mubr.f32.gmra.mxu0 %v2285
      %v2433 = vpop.f32.mrf.mxu0
      %v2434 = vadd.f32 0.0, %v2433
      %v2435 = vpop.f32.mrf.mxu0
      %2436 = vmatprep.mubr.f32.mxu0 0.0
      %2437 = vmatmul.mubr.f32.gmra.mxu0 %v2288
      %v2438 = vpop.f32.mrf.mxu0
      %v2439 = vadd.f32 0.0, %v2438
      %v2440 = vpop.f32.mrf.mxu0
      %2441 = vmatprep.mubr.f32.mxu0 0.0
      %2442 = vmatmul.mubr.f32.gmra.mxu0 %v2291
      %v2443 = vpop.f32.mrf.mxu0
      %v2444 = vadd.f32 0.0, %v2443
      %v2445 = vpop.f32.mrf.mxu0
      %2446 = vmatprep.mubr.f32.mxu0 0.0
      %2447 = vmatmul.mubr.f32.gmra.mxu0 %v2294
      %v2448 = vpop.f32.mrf.mxu0
      %v2449 = vadd.f32 0.0, %v2448
      %v2450 = vpop.f32.mrf.mxu0
      %2451 = vmatprep.mubr.f32.mxu0 0.0
      %2452 = vmatmul.mubr.f32.gmra.mxu0 %v2297
      %v2453 = vpop.f32.mrf.mxu0
      %v2454 = vadd.f32 0.0, %v2453
      %v2455 = vpop.f32.mrf.mxu0
      %2456 = vdwg.mxu0
      %v2457 = vadd.f32 %v2205, %v2369
      %v2458 = vadd.f32 %v2206, %v2374
      %v2459 = vadd.f32 %v2207, %v2379
      %v2460 = vadd.f32 %v2208, %v2384
      %v2461 = vadd.f32 %v2209, %v2389
      %v2462 = vadd.f32 %v2210, %v2394
      %v2463 = vadd.f32 %v2211, %v2399
      %v2464 = vadd.f32 %v2212, %v2404
      %v2465 = vadd.f32 %v2213, %v2409
      %v2466 = vadd.f32 %v2214, %v2414
      %v2467 = vadd.f32 %v2215, %v2419
      %v2468 = vadd.f32 %v2216, %v2424
      %v2469 = vadd.f32 %v2217, %v2429
      %v2470 = vadd.f32 %v2218, %v2434
      %v2471 = vadd.f32 %v2219, %v2439
      %v2472 = vadd.f32 %v2220, %v2444
      %v2473 = vadd.f32 %v2221, %v2449
      %v2474 = vadd.f32 %v2222, %v2454
      %v2475 = vld [vmem:[%s227] sm:$0x1]
      %v2477 = vlaneseq
      %v2478 = vshrl.u32 %v2477, 7
      %v2479 = vsub.s32 0, %v2478
      %v2480 = vrot.slane %v2475, %v2479
      %v2482 = vadd.f32 %v2457, %v2480
      %v2483 = vadd.f32 %v2458, %v2480
      %v2484 = vadd.f32 %v2459, %v2480
      %v2485 = vadd.f32 %v2460, %v2480
      %v2486 = vadd.f32 %v2461, %v2480
      %v2487 = vadd.f32 %v2462, %v2480
      %v2488 = vadd.f32 %v2463, %v2480
      %v2489 = vadd.f32 %v2464, %v2480
      %v2490 = vadd.f32 %v2465, %v2480
      %v2491 = vadd.f32 %v2466, %v2480
      %v2492 = vadd.f32 %v2467, %v2480
      %v2493 = vadd.f32 %v2468, %v2480
      %v2494 = vadd.f32 %v2469, %v2480
      %v2495 = vadd.f32 %v2470, %v2480
      %v2496 = vadd.f32 %v2471, %v2480
      %v2497 = vadd.f32 %v2472, %v2480
      %v2498 = vadd.f32 %v2473, %v2480
      %v2499 = vadd.f32 %v2474, %v2480
      %v2500 = vmax.f32 %v2482, 0.0
      %v2501 = vmax.f32 %v2483, 0.0
      %v2502 = vmax.f32 %v2484, 0.0
      %v2503 = vmax.f32 %v2485, 0.0
      %v2504 = vmax.f32 %v2486, 0.0
      %v2505 = vmax.f32 %v2487, 0.0
      %v2506 = vmax.f32 %v2488, 0.0
      %v2507 = vmax.f32 %v2489, 0.0
      %v2508 = vmax.f32 %v2490, 0.0
      %v2509 = vmax.f32 %v2491, 0.0
      %v2510 = vmax.f32 %v2492, 0.0
      %v2511 = vmax.f32 %v2493, 0.0
      %v2512 = vmax.f32 %v2494, 0.0
      %v2513 = vmax.f32 %v2495, 0.0
      %v2514 = vmax.f32 %v2496, 0.0
      %v2515 = vmax.f32 %v2497, 0.0
      %v2516 = vmax.f32 %v2498, 0.0
      %v2517 = vmax.f32 %v2499, 0.0
      %2518 = vst.msk [vmem:[%s240] sm:$0xff] %vm285, %v2500
      %2519 = vst.msk [vmem:[%s240 + $0x8] sm:$0xff] %vm285, %v2501
      %s2520 = scalar_lea.vmem %s240, 16
      %vm2521 = vcmask 31746
      %2522 = vst.msk [vmem:[%s2520 - $0x2] sm:$0xfc] %vm2521, %v2502
      %2523 = vst.msk [vmem:[%s2520 + $0x6] sm:$0xff] %vm285, %v2503
      %vm2524 = vcmask 25600
      %2525 = vst.msk [vmem:[%s2520 + $0xe] sm:$0x3] %vm2524, %v2504
      %s2526 = scalar_lea.vmem %s240, 32
      %vm2527 = vcmask 31748
      %2528 = vst.msk [vmem:[%s2526 - $0x4] sm:$0xf0] %vm2527, %v2504
      %2529 = vst.msk [vmem:[%s2526 + $0x4] sm:$0xff] %vm285, %v2505
      %vm2530 = vcmask 27648
      %2531 = vst.msk [vmem:[%s2526 + $0xc] sm:$0xf] %vm2530, %v2506
      %s2532 = scalar_lea.vmem %s240, 48
      %vm2533 = vcmask 31750
      %2534 = vst.msk [vmem:[%s2532 - $0x6] sm:$0xc0] %vm2533, %v2506
      %2535 = vst.msk [vmem:[%s2532 + $0x2] sm:$0xff] %vm285, %v2507
      %vm2536 = vcmask 29696
      %2537 = vst.msk [vmem:[%s2532 + $0xa] sm:$0x3f] %vm2536, %v2508
      %s2538 = scalar_lea.vmem %s240, 64
      %2539 = vst.msk [vmem:[%s2538] sm:$0xff] %vm285, %v2509
      %2540 = vst.msk [vmem:[%s2538 + $0x8] sm:$0xff] %vm285, %v2510
      %s2541 = scalar_lea.vmem %s240, 80
      %2542 = vst.msk [vmem:[%s2541 - $0x2] sm:$0xfc] %vm2521, %v2511
      %2543 = vst.msk [vmem:[%s2541 + $0x6] sm:$0xff] %vm285, %v2512
      %2544 = vst.msk [vmem:[%s2541 + $0xe] sm:$0x3] %vm2524, %v2513
      %s2545 = scalar_lea.vmem %s240, 96
      %2546 = vst.msk [vmem:[%s2545 - $0x4] sm:$0xf0] %vm2527, %v2513
      %2547 = vst.msk [vmem:[%s2545 + $0x4] sm:$0xff] %vm285, %v2514
      %2548 = vst.msk [vmem:[%s2545 + $0xc] sm:$0xf] %vm2530, %v2515
      %s2549 = scalar_lea.vmem %s240, 112
      %2550 = vst.msk [vmem:[%s2549 - $0x6] sm:$0xc0] %vm2533, %v2515
      %2551 = vst.msk [vmem:[%s2549 + $0x2] sm:$0xff] %vm285, %v2516
      %2552 = vst.msk [vmem:[%s2549 + $0xa] sm:$0x3f] %vm2536, %v2517
      %s2553 = smul.u32 8, %s20
      %p2554 = scmp.lt.s32.totalorder %s19, 1
      %s2555 = scalar_select %p2554, %s19, 1
      %p2556 = scmp.lt.s32.totalorder %s2553, 15
      %s2557 = scalar_select %p2556, %s2553, 15
      %p2558 = scmp.lt.s32.totalorder %s21, 0
      %s2559 = scalar_select %p2558, %s21, 0
      %s2560 = smul.addr %s2557, 2
      %s2561 = sadd.s32 %s2559, %s2560
      %s2562 = smul.addr %s2555, 32
      %s2563 = sadd.s32 %s2561, %s2562
      %s2564 = smul.addr %s2563, 8
      %s2565 = scalar_lea.vmem %s3, %s2564
      // Predicated region
      $region33: #{tpu_custom_call.1} parent=31 // pred_check
        %p2566 = pneg %p133
      $region34: #{tpu_custom_call.1} parent=31 // pred_check_branch
        %2568 = sbr.rel (%p2566) target = $region36
      $region35: #{tpu_custom_call.1} parent=31 // pred_region
        %s2569 = smul.u32 8, %s20
      $region36: #{tpu_custom_call.1} parent=31 // pred_fallthru
        _
    $region32: #{tpu_custom_call.1} parent=5 // pred_fallthru
      _
    %p2570 = scmp.le.s32.totalorder 2, %s9
    // Predicated region
    $region37: #{tpu_custom_call.1} parent=5 // pred_check
      %p2571 = pneg %p2570
    $region38: #{tpu_custom_call.1} parent=5 // pred_check_branch
      %2573 = sbr.rel (%p2571) target = $region40
    $region39: #{tpu_custom_call.1} parent=5 // pred_region
      %s2574 = ssub.s32 %s9, 2
      // Predicated region
      $region41: #{tpu_custom_call.1} parent=39 // pred_check
        %p2575 = pneg %p139
      $region42: #{tpu_custom_call.1} parent=39 // pred_check_branch
        %2577 = sbr.rel (%p2575) target = $region44
      $region43: #{tpu_custom_call.1} parent=39 // pred_region
        %s2578 = smul.u32 8, %s23
        %p2579 = scmp.lt.s32.totalorder %s22, 1
        %s2580 = scalar_select %p2579, %s22, 1
        %p2581 = scmp.lt.s32.totalorder %s2578, 15
        %s2582 = scalar_select %p2581, %s2578, 15
        %p2583 = scmp.lt.s32.totalorder %s24, 0
        %s2584 = scalar_select %p2583, %s24, 0
        %s2585 = smul.addr %s2582, 2
        %s2586 = sadd.s32 %s2584, %s2585
        %s2587 = smul.addr %s2580, 32
        %s2588 = sadd.s32 %s2586, %s2587
        %s2589 = smul.addr %s2588, 8
        %s2590 = scalar_lea.vmem %s3, %s2589
      $region44: #{tpu_custom_call.1} parent=39 // pred_fallthru
        _
    $region40: #{tpu_custom_call.1} parent=5 // pred_fallthru
      _
  $region6: #{tpu_custom_call.1} parent=0 // loop_footer
    %s13 = sadd.s32 1, %s9
  $region7: #{tpu_custom_call.1} parent=0 // loop_footer_branch
    %8 = sbr.rel target = $region3
  $region8: #{tpu_custom_call.1} parent=0 // loop_exit
    _

</llo_original>
